<compile_context>
chip_gen: v6e
topology: v6e:2x2x1
jax: 0.10.0
libtpu: 0.0.40
codegen_flags: <defaults>
</compile_context>

<pallas_src>
import functools

import jax
import jax.numpy as jnp
from jax.experimental import pallas as pl
from jax.experimental.pallas import tpu as pltpu

# ---- concrete cfg ----
IN_LEN = 4
OUT_LEN = 4
SEQ = IN_LEN + OUT_LEN - 1            # 7 timesteps total
BATCH = 2
CHANNELS = 8                          # 1 "radar" channel + 7 "ele" channels
HEIGHT = 16
WIDTH = 16
HW = HEIGHT * WIDTH                   # 256 lanes per sample (2 x 128)
EMBED_DIM = 32
HIDDEN_DIM = 32
USE_SS = True


def _fused_kernel(sel_ref, x_ref, w1a_ref, w1b_ref, bh_ref, w2_ref, bf_ref,
                  out_ref):
    """One grid step = the full 7-step recurrence for one batch sample.

    Layout: channels on sublanes, H*W on lanes (lane-dense, 256 lanes).
    sel_ref: (OUT_LEN-1, B) int32 teacher-forcing flags in SMEM (scalar
    prefetch).  Hidden state and the fed-back output are carried as values
    across the statically unrolled time loop (never stored to VMEM).
    """
    b = pl.program_id(0)

    # Hoist bias broadcasts out of the unrolled loop (no CSE of broadcasts).
    bh_b = jnp.broadcast_to(bh_ref[...], (HIDDEN_DIM, HW))
    bf_b = jnp.broadcast_to(bf_ref[...], (CHANNELS, HW))

    # layer_hiddens starts as None in PyTorch (cell zero-initializes it);
    # `output` is also undefined before the first decode step.
    h = jnp.zeros((HIDDEN_DIM, HW), jnp.float32)
    prev = jnp.zeros((CHANNELS, HW), jnp.float32)

    for t in range(SEQ):                         # static unroll, SEQ = 7
        x_t = x_ref[t, 0]                        # (C, HW) ground-truth frame
        if t < IN_LEN:
            inp = x_t                            # warm-up: always teacher-forced
        else:
            # scheduled sampling: per-(t, batch) 0/1 scalar blend
            s = sel_ref[t - IN_LEN, b].astype(jnp.float32)
            inp = s * x_t + (1.0 - s) * prev

        # embed folded into the rnn input weight (exact: embed is linear):
        #   pre = (We@Wxh)^T @ inp + Whh^T @ h + (bh + b_e@Wxh)
        pre = (jnp.dot(w1a_ref[...], inp, preferred_element_type=jnp.float32)
               + jnp.dot(w1b_ref[...], h, preferred_element_type=jnp.float32)
               + bh_b)
        h = jnp.tanh(pre)                                         # (HID, HW)

        # fc: 1x1 conv back to data channels
        out = jnp.dot(w2_ref[...], h,
                      preferred_element_type=jnp.float32) + bf_b  # (C, HW)
        prev = out
        out_ref[t, 0] = out.astype(out_ref.dtype)   # lane-dense VMEM store


@functools.partial(jax.jit, static_argnames=("use_ss",))
def model_forward(x, eta, params, ss_key, use_ss=USE_SS):
    """x: (S, B, C, H, W) with S = IN_LEN + OUT_LEN - 1 (NCHW per step)."""
    we, be, wxh, whh, bh, wf, bf = params
    S, B, C, H, W = x.shape
    hw = H * W

    # ---- fold embed (linear) into the rnn input weight & bias (exact).
    # TODO(synk): if the real `make_layers(embed)` has a nonlinearity, this
    # fold is invalid and the embed matmul must be applied per step instead.
    w1a_t = (we @ wxh).T                                  # (HID, C)
    w1b_t = whh.T                                         # (HID, HID)
    bh_eff = (bh + be @ wxh).reshape(HIDDEN_DIM, 1)       # (HID, 1)
    w2_t = wf.T                                           # (C, HID)
    bf2 = bf.reshape(CHANNELS, 1)                         # (C, 1)

    # ---- per-(t, batch) teacher-forcing flags (int32 in SMEM).
    # TODO(synk): the PyTorch ss_ele builds per-channel masks with a
    # broadcasting quirk only shape-consistent for batch==1; the mask value is
    # identical for every channel of a sample, so a single per-(t, batch)
    # selector is the intended semantics and is used here.  PyTorch draws the
    # mask with np.random; we use a JAX PRNG key instead.
    if use_ss:
        flips = (jax.random.uniform(ss_key, (OUT_LEN - 1, B)) < eta)
        flips = flips.astype(jnp.int32)
    else:
        flips = jnp.zeros((OUT_LEN - 1, B), jnp.int32)

    # Free reshape (merges the two trailing dims) -- no transpose, no copy.
    x4 = x.reshape(S, B, C, hw)

    out = pl.pallas_call(
        _fused_kernel,
        out_shape=jax.ShapeDtypeStruct((S, B, C, hw), jnp.float32),
        grid_spec=pltpu.PrefetchScalarGridSpec(
            num_scalar_prefetch=1,            # flips -> SMEM
            grid=(B,),                        # one grid step per sample
            in_specs=[
                pl.BlockSpec((S, 1, C, hw), lambda b, sel: (0, b, 0, 0)),
                pl.BlockSpec(w1a_t.shape, lambda b, sel: (0, 0)),
                pl.BlockSpec(w1b_t.shape, lambda b, sel: (0, 0)),
                pl.BlockSpec(bh_eff.shape, lambda b, sel: (0, 0)),
                pl.BlockSpec(w2_t.shape, lambda b, sel: (0, 0)),
                pl.BlockSpec(bf2.shape, lambda b, sel: (0, 0)),
            ],
            out_specs=pl.BlockSpec((S, 1, C, hw), lambda b, sel: (0, b, 0, 0)),
        ),
        compiler_params=pltpu.CompilerParams(
            dimension_semantics=("parallel",)),
    )(flips, x4, w1a_t, w1b_t, bh_eff, w2_t, bf2)

    return out.reshape(S, B, C, H, W)


def init_params(key):
    k = jax.random.split(key, 7)
    scale = 0.1
    we = scale * jax.random.normal(k[0], (CHANNELS, EMBED_DIM), jnp.float32)
    be = scale * jax.random.normal(k[1], (1, EMBED_DIM), jnp.float32)
    wxh = scale * jax.random.normal(k[2], (EMBED_DIM, HIDDEN_DIM), jnp.float32)
    whh = scale * jax.random.normal(k[3], (HIDDEN_DIM, HIDDEN_DIM), jnp.float32)
    bh = jnp.zeros((1, HIDDEN_DIM), jnp.float32)
    wf = scale * jax.random.normal(k[4], (HIDDEN_DIM, CHANNELS), jnp.float32)
    bf = jnp.zeros((1, CHANNELS), jnp.float32)
    return we, be, wxh, whh, bh, wf, bf


if __name__ == "__main__":
    root = jax.random.PRNGKey(0)
    k_x, k_p, k_ss = jax.random.split(root, 3)

    x = jax.random.normal(k_x, (SEQ, BATCH, CHANNELS, HEIGHT, WIDTH),
                          jnp.float32)
    eta = 0.5
    params = init_params(k_p)

    outputs = model_forward(x, eta, params, k_ss)
    outputs = jax.block_until_ready(outputs)

    assert outputs.shape == (SEQ, BATCH, CHANNELS, HEIGHT, WIDTH), outputs.shape
    assert bool(jnp.all(jnp.isfinite(outputs)))
    print("KERNEL_OK")
</pallas_src>

<mosaic_0001>
module attributes {stable_mosaic.version = 11 : i64} {
  func.func @_fused_kernel(%arg0: i32, %arg1: memref<3x2xi32, #tpu.memory_space<smem>>, %arg2: memref<7x1x8x256xf32, #tpu.memory_space<vmem>>, %arg3: memref<32x8xf32, #tpu.memory_space<vmem>>, %arg4: memref<32x32xf32, #tpu.memory_space<vmem>>, %arg5: memref<32x1xf32, #tpu.memory_space<vmem>>, %arg6: memref<8x32xf32, #tpu.memory_space<vmem>>, %arg7: memref<8x1xf32, #tpu.memory_space<vmem>>, %arg8: memref<7x1x8x256xf32, #tpu.memory_space<vmem>>) attributes {dimension_semantics = [#tpu.dimension_semantics<parallel>], iteration_bounds = array<i64: 2>, scalar_prefetch = 1 : i64, scratch_operands = 0 : i64, tpu.core_type = #tpu.core_type<tc>, window_params = [{transform_indices = @transform_0, window_bounds = array<i64: 7, 1, 8, 256>}, {pipeline_mode = #tpu.pipeline_mode<synchronous>, transform_indices = @transform_1, window_bounds = array<i64: 32, 8>}, {pipeline_mode = #tpu.pipeline_mode<synchronous>, transform_indices = @transform_2, window_bounds = array<i64: 32, 32>}, {pipeline_mode = #tpu.pipeline_mode<synchronous>, transform_indices = @transform_3, window_bounds = array<i64: 32, 1>}, {pipeline_mode = #tpu.pipeline_mode<synchronous>, transform_indices = @transform_4, window_bounds = array<i64: 8, 32>}, {pipeline_mode = #tpu.pipeline_mode<synchronous>, transform_indices = @transform_5, window_bounds = array<i64: 8, 1>}, {transform_indices = @transform_6, window_bounds = array<i64: 7, 1, 8, 256>}]} {
    %c0 = arith.constant 0 : index
    %c0_0 = arith.constant 0 : index
    %0 = vector.load %arg5[%c0, %c0_0] : memref<32x1xf32, #tpu.memory_space<vmem>>, vector<32x1xf32>
    %1 = vector.shape_cast %0 : vector<32x1xf32> to vector<32x1xf32>
    %2 = vector.broadcast %1 : vector<32x1xf32> to vector<32x256xf32>
    %c0_1 = arith.constant 0 : index
    %c0_2 = arith.constant 0 : index
    %3 = vector.load %arg7[%c0_1, %c0_2] : memref<8x1xf32, #tpu.memory_space<vmem>>, vector<8x1xf32>
    %4 = vector.shape_cast %3 : vector<8x1xf32> to vector<8x1xf32>
    %5 = vector.broadcast %4 : vector<8x1xf32> to vector<8x256xf32>
    %cst = arith.constant 0.000000e+00 : f32
    %6 = vector.broadcast %cst : f32 to vector<32x256xf32>
    %c0_3 = arith.constant 0 : index
    %c0_4 = arith.constant 0 : index
    %c0_5 = arith.constant 0 : index
    %c0_6 = arith.constant 0 : index
    %7 = vector.load %arg2[%c0_3, %c0_4, %c0_5, %c0_6] : memref<7x1x8x256xf32, #tpu.memory_space<vmem>>, vector<1x1x8x256xf32>
    %8 = vector.shape_cast %7 : vector<1x1x8x256xf32> to vector<8x256xf32>
    %c0_7 = arith.constant 0 : index
    %c0_8 = arith.constant 0 : index
    %9 = vector.load %arg3[%c0_7, %c0_8] : memref<32x8xf32, #tpu.memory_space<vmem>>, vector<32x8xf32>
    %cst_9 = arith.constant dense<0.000000e+00> : vector<32x256xf32>
    %10 = tpu.matmul %9, %8, %cst_9 {dimension_numbers = #tpu.dot_dimension_numbers<[1], [0], [0], [1], [0, 0, 1, 1], [], []>} : vector<32x8xf32>, vector<8x256xf32>, vector<32x256xf32> -> vector<32x256xf32>
    %c0_10 = arith.constant 0 : index
    %c0_11 = arith.constant 0 : index
    %11 = vector.load %arg4[%c0_10, %c0_11] : memref<32x32xf32, #tpu.memory_space<vmem>>, vector<32x32xf32>
    %cst_12 = arith.constant dense<0.000000e+00> : vector<32x256xf32>
    %12 = tpu.matmul %11, %6, %cst_12 {dimension_numbers = #tpu.dot_dimension_numbers<[1], [0], [0], [1], [0, 0, 1, 1], [], []>} : vector<32x32xf32>, vector<32x256xf32>, vector<32x256xf32> -> vector<32x256xf32>
    %13 = arith.addf %10, %12 : vector<32x256xf32>
    %14 = arith.addf %13, %2 : vector<32x256xf32>
    %15 = math.tanh %14 : vector<32x256xf32>
    %c0_13 = arith.constant 0 : index
    %c0_14 = arith.constant 0 : index
    %16 = vector.load %arg6[%c0_13, %c0_14] : memref<8x32xf32, #tpu.memory_space<vmem>>, vector<8x32xf32>
    %cst_15 = arith.constant dense<0.000000e+00> : vector<8x256xf32>
    %17 = tpu.matmul %16, %15, %cst_15 {dimension_numbers = #tpu.dot_dimension_numbers<[1], [0], [0], [1], [0, 0, 1, 1], [], []>} : vector<8x32xf32>, vector<32x256xf32>, vector<8x256xf32> -> vector<8x256xf32>
    %18 = arith.addf %17, %5 : vector<8x256xf32>
    %c0_16 = arith.constant 0 : index
    %c0_17 = arith.constant 0 : index
    %c0_18 = arith.constant 0 : index
    %c0_19 = arith.constant 0 : index
    %19 = vector.load %arg8[%c0_16, %c0_17, %c0_18, %c0_19] : memref<7x1x8x256xf32, #tpu.memory_space<vmem>>, vector<1x1x8x256xf32>
    %20 = vector.shape_cast %19 : vector<1x1x8x256xf32> to vector<8x256xf32>
    %21 = vector.shape_cast %18 : vector<8x256xf32> to vector<1x1x8x256xf32>
    tpu.vector_store %arg8[%c0_16, %c0_17, %c0_18, %c0_19], %21 {strides = array<i32>} : memref<7x1x8x256xf32, #tpu.memory_space<vmem>>, vector<1x1x8x256xf32>,
    %c1 = arith.constant 1 : index
    %c0_20 = arith.constant 0 : index
    %c0_21 = arith.constant 0 : index
    %c0_22 = arith.constant 0 : index
    %22 = vector.load %arg2[%c1, %c0_20, %c0_21, %c0_22] : memref<7x1x8x256xf32, #tpu.memory_space<vmem>>, vector<1x1x8x256xf32>
    %23 = vector.shape_cast %22 : vector<1x1x8x256xf32> to vector<8x256xf32>
    %c0_23 = arith.constant 0 : index
    %c0_24 = arith.constant 0 : index
    %24 = vector.load %arg3[%c0_23, %c0_24] : memref<32x8xf32, #tpu.memory_space<vmem>>, vector<32x8xf32>
    %cst_25 = arith.constant dense<0.000000e+00> : vector<32x256xf32>
    %25 = tpu.matmul %24, %23, %cst_25 {dimension_numbers = #tpu.dot_dimension_numbers<[1], [0], [0], [1], [0, 0, 1, 1], [], []>} : vector<32x8xf32>, vector<8x256xf32>, vector<32x256xf32> -> vector<32x256xf32>
    %c0_26 = arith.constant 0 : index
    %c0_27 = arith.constant 0 : index
    %26 = vector.load %arg4[%c0_26, %c0_27] : memref<32x32xf32, #tpu.memory_space<vmem>>, vector<32x32xf32>
    %cst_28 = arith.constant dense<0.000000e+00> : vector<32x256xf32>
    %27 = tpu.matmul %26, %15, %cst_28 {dimension_numbers = #tpu.dot_dimension_numbers<[1], [0], [0], [1], [0, 0, 1, 1], [], []>} : vector<32x32xf32>, vector<32x256xf32>, vector<32x256xf32> -> vector<32x256xf32>
    %28 = arith.addf %25, %27 : vector<32x256xf32>
    %29 = arith.addf %28, %2 : vector<32x256xf32>
    %30 = math.tanh %29 : vector<32x256xf32>
    %c0_29 = arith.constant 0 : index
    %c0_30 = arith.constant 0 : index
    %31 = vector.load %arg6[%c0_29, %c0_30] : memref<8x32xf32, #tpu.memory_space<vmem>>, vector<8x32xf32>
    %cst_31 = arith.constant dense<0.000000e+00> : vector<8x256xf32>
    %32 = tpu.matmul %31, %30, %cst_31 {dimension_numbers = #tpu.dot_dimension_numbers<[1], [0], [0], [1], [0, 0, 1, 1], [], []>} : vector<8x32xf32>, vector<32x256xf32>, vector<8x256xf32> -> vector<8x256xf32>
    %33 = arith.addf %32, %5 : vector<8x256xf32>
    %c1_32 = arith.constant 1 : index
    %c0_33 = arith.constant 0 : index
    %c0_34 = arith.constant 0 : index
    %c0_35 = arith.constant 0 : index
    %34 = vector.load %arg8[%c1_32, %c0_33, %c0_34, %c0_35] : memref<7x1x8x256xf32, #tpu.memory_space<vmem>>, vector<1x1x8x256xf32>
    %35 = vector.shape_cast %34 : vector<1x1x8x256xf32> to vector<8x256xf32>
    %36 = vector.shape_cast %33 : vector<8x256xf32> to vector<1x1x8x256xf32>
    tpu.vector_store %arg8[%c1_32, %c0_33, %c0_34, %c0_35], %36 {strides = array<i32>} : memref<7x1x8x256xf32, #tpu.memory_space<vmem>>, vector<1x1x8x256xf32>,
    %c2 = arith.constant 2 : index
    %c0_36 = arith.constant 0 : index
    %c0_37 = arith.constant 0 : index
    %c0_38 = arith.constant 0 : index
    %37 = vector.load %arg2[%c2, %c0_36, %c0_37, %c0_38] : memref<7x1x8x256xf32, #tpu.memory_space<vmem>>, vector<1x1x8x256xf32>
    %38 = vector.shape_cast %37 : vector<1x1x8x256xf32> to vector<8x256xf32>
    %c0_39 = arith.constant 0 : index
    %c0_40 = arith.constant 0 : index
    %39 = vector.load %arg3[%c0_39, %c0_40] : memref<32x8xf32, #tpu.memory_space<vmem>>, vector<32x8xf32>
    %cst_41 = arith.constant dense<0.000000e+00> : vector<32x256xf32>
    %40 = tpu.matmul %39, %38, %cst_41 {dimension_numbers = #tpu.dot_dimension_numbers<[1], [0], [0], [1], [0, 0, 1, 1], [], []>} : vector<32x8xf32>, vector<8x256xf32>, vector<32x256xf32> -> vector<32x256xf32>
    %c0_42 = arith.constant 0 : index
    %c0_43 = arith.constant 0 : index
    %41 = vector.load %arg4[%c0_42, %c0_43] : memref<32x32xf32, #tpu.memory_space<vmem>>, vector<32x32xf32>
    %cst_44 = arith.constant dense<0.000000e+00> : vector<32x256xf32>
    %42 = tpu.matmul %41, %30, %cst_44 {dimension_numbers = #tpu.dot_dimension_numbers<[1], [0], [0], [1], [0, 0, 1, 1], [], []>} : vector<32x32xf32>, vector<32x256xf32>, vector<32x256xf32> -> vector<32x256xf32>
    %43 = arith.addf %40, %42 : vector<32x256xf32>
    %44 = arith.addf %43, %2 : vector<32x256xf32>
    %45 = math.tanh %44 : vector<32x256xf32>
    %c0_45 = arith.constant 0 : index
    %c0_46 = arith.constant 0 : index
    %46 = vector.load %arg6[%c0_45, %c0_46] : memref<8x32xf32, #tpu.memory_space<vmem>>, vector<8x32xf32>
    %cst_47 = arith.constant dense<0.000000e+00> : vector<8x256xf32>
    %47 = tpu.matmul %46, %45, %cst_47 {dimension_numbers = #tpu.dot_dimension_numbers<[1], [0], [0], [1], [0, 0, 1, 1], [], []>} : vector<8x32xf32>, vector<32x256xf32>, vector<8x256xf32> -> vector<8x256xf32>
    %48 = arith.addf %47, %5 : vector<8x256xf32>
    %c2_48 = arith.constant 2 : index
    %c0_49 = arith.constant 0 : index
    %c0_50 = arith.constant 0 : index
    %c0_51 = arith.constant 0 : index
    %49 = vector.load %arg8[%c2_48, %c0_49, %c0_50, %c0_51] : memref<7x1x8x256xf32, #tpu.memory_space<vmem>>, vector<1x1x8x256xf32>
    %50 = vector.shape_cast %49 : vector<1x1x8x256xf32> to vector<8x256xf32>
    %51 = vector.shape_cast %48 : vector<8x256xf32> to vector<1x1x8x256xf32>
    tpu.vector_store %arg8[%c2_48, %c0_49, %c0_50, %c0_51], %51 {strides = array<i32>} : memref<7x1x8x256xf32, #tpu.memory_space<vmem>>, vector<1x1x8x256xf32>,
    %c3 = arith.constant 3 : index
    %c0_52 = arith.constant 0 : index
    %c0_53 = arith.constant 0 : index
    %c0_54 = arith.constant 0 : index
    %52 = vector.load %arg2[%c3, %c0_52, %c0_53, %c0_54] : memref<7x1x8x256xf32, #tpu.memory_space<vmem>>, vector<1x1x8x256xf32>
    %53 = vector.shape_cast %52 : vector<1x1x8x256xf32> to vector<8x256xf32>
    %c0_55 = arith.constant 0 : index
    %c0_56 = arith.constant 0 : index
    %54 = vector.load %arg3[%c0_55, %c0_56] : memref<32x8xf32, #tpu.memory_space<vmem>>, vector<32x8xf32>
    %cst_57 = arith.constant dense<0.000000e+00> : vector<32x256xf32>
    %55 = tpu.matmul %54, %53, %cst_57 {dimension_numbers = #tpu.dot_dimension_numbers<[1], [0], [0], [1], [0, 0, 1, 1], [], []>} : vector<32x8xf32>, vector<8x256xf32>, vector<32x256xf32> -> vector<32x256xf32>
    %c0_58 = arith.constant 0 : index
    %c0_59 = arith.constant 0 : index
    %56 = vector.load %arg4[%c0_58, %c0_59] : memref<32x32xf32, #tpu.memory_space<vmem>>, vector<32x32xf32>
    %cst_60 = arith.constant dense<0.000000e+00> : vector<32x256xf32>
    %57 = tpu.matmul %56, %45, %cst_60 {dimension_numbers = #tpu.dot_dimension_numbers<[1], [0], [0], [1], [0, 0, 1, 1], [], []>} : vector<32x32xf32>, vector<32x256xf32>, vector<32x256xf32> -> vector<32x256xf32>
    %58 = arith.addf %55, %57 : vector<32x256xf32>
    %59 = arith.addf %58, %2 : vector<32x256xf32>
    %60 = math.tanh %59 : vector<32x256xf32>
    %c0_61 = arith.constant 0 : index
    %c0_62 = arith.constant 0 : index
    %61 = vector.load %arg6[%c0_61, %c0_62] : memref<8x32xf32, #tpu.memory_space<vmem>>, vector<8x32xf32>
    %cst_63 = arith.constant dense<0.000000e+00> : vector<8x256xf32>
    %62 = tpu.matmul %61, %60, %cst_63 {dimension_numbers = #tpu.dot_dimension_numbers<[1], [0], [0], [1], [0, 0, 1, 1], [], []>} : vector<8x32xf32>, vector<32x256xf32>, vector<8x256xf32> -> vector<8x256xf32>
    %63 = arith.addf %62, %5 : vector<8x256xf32>
    %c3_64 = arith.constant 3 : index
    %c0_65 = arith.constant 0 : index
    %c0_66 = arith.constant 0 : index
    %c0_67 = arith.constant 0 : index
    %64 = vector.load %arg8[%c3_64, %c0_65, %c0_66, %c0_67] : memref<7x1x8x256xf32, #tpu.memory_space<vmem>>, vector<1x1x8x256xf32>
    %65 = vector.shape_cast %64 : vector<1x1x8x256xf32> to vector<8x256xf32>
    %66 = vector.shape_cast %63 : vector<8x256xf32> to vector<1x1x8x256xf32>
    tpu.vector_store %arg8[%c3_64, %c0_65, %c0_66, %c0_67], %66 {strides = array<i32>} : memref<7x1x8x256xf32, #tpu.memory_space<vmem>>, vector<1x1x8x256xf32>,
    %c4 = arith.constant 4 : index
    %c0_68 = arith.constant 0 : index
    %c0_69 = arith.constant 0 : index
    %c0_70 = arith.constant 0 : index
    %67 = vector.load %arg2[%c4, %c0_68, %c0_69, %c0_70] : memref<7x1x8x256xf32, #tpu.memory_space<vmem>>, vector<1x1x8x256xf32>
    %68 = vector.shape_cast %67 : vector<1x1x8x256xf32> to vector<8x256xf32>
    %c0_71 = arith.constant 0 : index
    %69 = arith.index_cast %arg0 : i32 to index
    %70 = memref.load %arg1[%c0_71, %69] : memref<3x2xi32, #tpu.memory_space<smem>>
    %71 = arith.sitofp %70 : i32 to f32
    %72 = vector.broadcast %71 : f32 to vector<8x256xf32>
    %73 = arith.mulf %72, %68 : vector<8x256xf32>
    %cst_72 = arith.constant 1.000000e+00 : f32
    %74 = arith.subf %cst_72, %71 : f32
    %75 = vector.broadcast %74 : f32 to vector<8x256xf32>
    %76 = arith.mulf %75, %63 : vector<8x256xf32>
    %77 = arith.addf %73, %76 : vector<8x256xf32>
    %c0_73 = arith.constant 0 : index
    %c0_74 = arith.constant 0 : index
    %78 = vector.load %arg3[%c0_73, %c0_74] : memref<32x8xf32, #tpu.memory_space<vmem>>, vector<32x8xf32>
    %cst_75 = arith.constant dense<0.000000e+00> : vector<32x256xf32>
    %79 = tpu.matmul %78, %77, %cst_75 {dimension_numbers = #tpu.dot_dimension_numbers<[1], [0], [0], [1], [0, 0, 1, 1], [], []>} : vector<32x8xf32>, vector<8x256xf32>, vector<32x256xf32> -> vector<32x256xf32>
    %c0_76 = arith.constant 0 : index
    %c0_77 = arith.constant 0 : index
    %80 = vector.load %arg4[%c0_76, %c0_77] : memref<32x32xf32, #tpu.memory_space<vmem>>, vector<32x32xf32>
    %cst_78 = arith.constant dense<0.000000e+00> : vector<32x256xf32>
    %81 = tpu.matmul %80, %60, %cst_78 {dimension_numbers = #tpu.dot_dimension_numbers<[1], [0], [0], [1], [0, 0, 1, 1], [], []>} : vector<32x32xf32>, vector<32x256xf32>, vector<32x256xf32> -> vector<32x256xf32>
    %82 = arith.addf %79, %81 : vector<32x256xf32>
    %83 = arith.addf %82, %2 : vector<32x256xf32>
    %84 = math.tanh %83 : vector<32x256xf32>
    %c0_79 = arith.constant 0 : index
    %c0_80 = arith.constant 0 : index
    %85 = vector.load %arg6[%c0_79, %c0_80] : memref<8x32xf32, #tpu.memory_space<vmem>>, vector<8x32xf32>
    %cst_81 = arith.constant dense<0.000000e+00> : vector<8x256xf32>
    %86 = tpu.matmul %85, %84, %cst_81 {dimension_numbers = #tpu.dot_dimension_numbers<[1], [0], [0], [1], [0, 0, 1, 1], [], []>} : vector<8x32xf32>, vector<32x256xf32>, vector<8x256xf32> -> vector<8x256xf32>
    %87 = arith.addf %86, %5 : vector<8x256xf32>
    %c4_82 = arith.constant 4 : index
    %c0_83 = arith.constant 0 : index
    %c0_84 = arith.constant 0 : index
    %c0_85 = arith.constant 0 : index
    %88 = vector.load %arg8[%c4_82, %c0_83, %c0_84, %c0_85] : memref<7x1x8x256xf32, #tpu.memory_space<vmem>>, vector<1x1x8x256xf32>
    %89 = vector.shape_cast %88 : vector<1x1x8x256xf32> to vector<8x256xf32>
    %90 = vector.shape_cast %87 : vector<8x256xf32> to vector<1x1x8x256xf32>
    tpu.vector_store %arg8[%c4_82, %c0_83, %c0_84, %c0_85], %90 {strides = array<i32>} : memref<7x1x8x256xf32, #tpu.memory_space<vmem>>, vector<1x1x8x256xf32>,
    %c5 = arith.constant 5 : index
    %c0_86 = arith.constant 0 : index
    %c0_87 = arith.constant 0 : index
    %c0_88 = arith.constant 0 : index
    %91 = vector.load %arg2[%c5, %c0_86, %c0_87, %c0_88] : memref<7x1x8x256xf32, #tpu.memory_space<vmem>>, vector<1x1x8x256xf32>
    %92 = vector.shape_cast %91 : vector<1x1x8x256xf32> to vector<8x256xf32>
    %c1_89 = arith.constant 1 : index
    %93 = arith.index_cast %arg0 : i32 to index
    %94 = memref.load %arg1[%c1_89, %93] : memref<3x2xi32, #tpu.memory_space<smem>>
    %95 = arith.sitofp %94 : i32 to f32
    %96 = vector.broadcast %95 : f32 to vector<8x256xf32>
    %97 = arith.mulf %96, %92 : vector<8x256xf32>
    %cst_90 = arith.constant 1.000000e+00 : f32
    %98 = arith.subf %cst_90, %95 : f32
    %99 = vector.broadcast %98 : f32 to vector<8x256xf32>
    %100 = arith.mulf %99, %87 : vector<8x256xf32>
    %101 = arith.addf %97, %100 : vector<8x256xf32>
    %c0_91 = arith.constant 0 : index
    %c0_92 = arith.constant 0 : index
    %102 = vector.load %arg3[%c0_91, %c0_92] : memref<32x8xf32, #tpu.memory_space<vmem>>, vector<32x8xf32>
    %cst_93 = arith.constant dense<0.000000e+00> : vector<32x256xf32>
    %103 = tpu.matmul %102, %101, %cst_93 {dimension_numbers = #tpu.dot_dimension_numbers<[1], [0], [0], [1], [0, 0, 1, 1], [], []>} : vector<32x8xf32>, vector<8x256xf32>, vector<32x256xf32> -> vector<32x256xf32>
    %c0_94 = arith.constant 0 : index
    %c0_95 = arith.constant 0 : index
    %104 = vector.load %arg4[%c0_94, %c0_95] : memref<32x32xf32, #tpu.memory_space<vmem>>, vector<32x32xf32>
    %cst_96 = arith.constant dense<0.000000e+00> : vector<32x256xf32>
    %105 = tpu.matmul %104, %84, %cst_96 {dimension_numbers = #tpu.dot_dimension_numbers<[1], [0], [0], [1], [0, 0, 1, 1], [], []>} : vector<32x32xf32>, vector<32x256xf32>, vector<32x256xf32> -> vector<32x256xf32>
    %106 = arith.addf %103, %105 : vector<32x256xf32>
    %107 = arith.addf %106, %2 : vector<32x256xf32>
    %108 = math.tanh %107 : vector<32x256xf32>
    %c0_97 = arith.constant 0 : index
    %c0_98 = arith.constant 0 : index
    %109 = vector.load %arg6[%c0_97, %c0_98] : memref<8x32xf32, #tpu.memory_space<vmem>>, vector<8x32xf32>
    %cst_99 = arith.constant dense<0.000000e+00> : vector<8x256xf32>
    %110 = tpu.matmul %109, %108, %cst_99 {dimension_numbers = #tpu.dot_dimension_numbers<[1], [0], [0], [1], [0, 0, 1, 1], [], []>} : vector<8x32xf32>, vector<32x256xf32>, vector<8x256xf32> -> vector<8x256xf32>
    %111 = arith.addf %110, %5 : vector<8x256xf32>
    %c5_100 = arith.constant 5 : index
    %c0_101 = arith.constant 0 : index
    %c0_102 = arith.constant 0 : index
    %c0_103 = arith.constant 0 : index
    %112 = vector.load %arg8[%c5_100, %c0_101, %c0_102, %c0_103] : memref<7x1x8x256xf32, #tpu.memory_space<vmem>>, vector<1x1x8x256xf32>
    %113 = vector.shape_cast %112 : vector<1x1x8x256xf32> to vector<8x256xf32>
    %114 = vector.shape_cast %111 : vector<8x256xf32> to vector<1x1x8x256xf32>
    tpu.vector_store %arg8[%c5_100, %c0_101, %c0_102, %c0_103], %114 {strides = array<i32>} : memref<7x1x8x256xf32, #tpu.memory_space<vmem>>, vector<1x1x8x256xf32>,
    %c6 = arith.constant 6 : index
    %c0_104 = arith.constant 0 : index
    %c0_105 = arith.constant 0 : index
    %c0_106 = arith.constant 0 : index
    %115 = vector.load %arg2[%c6, %c0_104, %c0_105, %c0_106] : memref<7x1x8x256xf32, #tpu.memory_space<vmem>>, vector<1x1x8x256xf32>
    %116 = vector.shape_cast %115 : vector<1x1x8x256xf32> to vector<8x256xf32>
    %c2_107 = arith.constant 2 : index
    %117 = arith.index_cast %arg0 : i32 to index
    %118 = memref.load %arg1[%c2_107, %117] : memref<3x2xi32, #tpu.memory_space<smem>>
    %119 = arith.sitofp %118 : i32 to f32
    %120 = vector.broadcast %119 : f32 to vector<8x256xf32>
    %121 = arith.mulf %120, %116 : vector<8x256xf32>
    %cst_108 = arith.constant 1.000000e+00 : f32
    %122 = arith.subf %cst_108, %119 : f32
    %123 = vector.broadcast %122 : f32 to vector<8x256xf32>
    %124 = arith.mulf %123, %111 : vector<8x256xf32>
    %125 = arith.addf %121, %124 : vector<8x256xf32>
    %c0_109 = arith.constant 0 : index
    %c0_110 = arith.constant 0 : index
    %126 = vector.load %arg3[%c0_109, %c0_110] : memref<32x8xf32, #tpu.memory_space<vmem>>, vector<32x8xf32>
    %cst_111 = arith.constant dense<0.000000e+00> : vector<32x256xf32>
    %127 = tpu.matmul %126, %125, %cst_111 {dimension_numbers = #tpu.dot_dimension_numbers<[1], [0], [0], [1], [0, 0, 1, 1], [], []>} : vector<32x8xf32>, vector<8x256xf32>, vector<32x256xf32> -> vector<32x256xf32>
    %c0_112 = arith.constant 0 : index
    %c0_113 = arith.constant 0 : index
    %128 = vector.load %arg4[%c0_112, %c0_113] : memref<32x32xf32, #tpu.memory_space<vmem>>, vector<32x32xf32>
    %cst_114 = arith.constant dense<0.000000e+00> : vector<32x256xf32>
    %129 = tpu.matmul %128, %108, %cst_114 {dimension_numbers = #tpu.dot_dimension_numbers<[1], [0], [0], [1], [0, 0, 1, 1], [], []>} : vector<32x32xf32>, vector<32x256xf32>, vector<32x256xf32> -> vector<32x256xf32>
    %130 = arith.addf %127, %129 : vector<32x256xf32>
    %131 = arith.addf %130, %2 : vector<32x256xf32>
    %132 = math.tanh %131 : vector<32x256xf32>
    %c0_115 = arith.constant 0 : index
    %c0_116 = arith.constant 0 : index
    %133 = vector.load %arg6[%c0_115, %c0_116] : memref<8x32xf32, #tpu.memory_space<vmem>>, vector<8x32xf32>
    %cst_117 = arith.constant dense<0.000000e+00> : vector<8x256xf32>
    %134 = tpu.matmul %133, %132, %cst_117 {dimension_numbers = #tpu.dot_dimension_numbers<[1], [0], [0], [1], [0, 0, 1, 1], [], []>} : vector<8x32xf32>, vector<32x256xf32>, vector<8x256xf32> -> vector<8x256xf32>
    %135 = arith.addf %134, %5 : vector<8x256xf32>
    %c6_118 = arith.constant 6 : index
    %c0_119 = arith.constant 0 : index
    %c0_120 = arith.constant 0 : index
    %c0_121 = arith.constant 0 : index
    %136 = vector.load %arg8[%c6_118, %c0_119, %c0_120, %c0_121] : memref<7x1x8x256xf32, #tpu.memory_space<vmem>>, vector<1x1x8x256xf32>
    %137 = vector.shape_cast %136 : vector<1x1x8x256xf32> to vector<8x256xf32>
    %138 = vector.shape_cast %135 : vector<8x256xf32> to vector<1x1x8x256xf32>
    tpu.vector_store %arg8[%c6_118, %c0_119, %c0_120, %c0_121], %138 {strides = array<i32>} : memref<7x1x8x256xf32, #tpu.memory_space<vmem>>, vector<1x1x8x256xf32>,
    return
  }
  func.func @transform_0(%arg0: i32, %arg1: memref<3x2xi32, #tpu.memory_space<smem>>) -> (i32, i32, i32, i32) {
    %c0_i32 = arith.constant 0 : i32
    %c0_i32_0 = arith.constant 0 : i32
    %c0_i32_1 = arith.constant 0 : i32
    %c0_i32_2 = arith.constant 0 : i32
    return %c0_i32, %arg0, %c0_i32_0, %c0_i32_1 : i32, i32, i32, i32
  }
  func.func @transform_1(%arg0: i32, %arg1: memref<3x2xi32, #tpu.memory_space<smem>>) -> (i32, i32) {
    %c0_i32 = arith.constant 0 : i32
    %c0_i32_0 = arith.constant 0 : i32
    %c0_i32_1 = arith.constant 0 : i32
    return %c0_i32, %c0_i32_0 : i32, i32
  }
  func.func @transform_2(%arg0: i32, %arg1: memref<3x2xi32, #tpu.memory_space<smem>>) -> (i32, i32) {
    %c0_i32 = arith.constant 0 : i32
    %c0_i32_0 = arith.constant 0 : i32
    %c0_i32_1 = arith.constant 0 : i32
    return %c0_i32, %c0_i32_0 : i32, i32
  }
  func.func @transform_3(%arg0: i32, %arg1: memref<3x2xi32, #tpu.memory_space<smem>>) -> (i32, i32) {
    %c0_i32 = arith.constant 0 : i32
    %c0_i32_0 = arith.constant 0 : i32
    %c0_i32_1 = arith.constant 0 : i32
    return %c0_i32, %c0_i32_0 : i32, i32
  }
  func.func @transform_4(%arg0: i32, %arg1: memref<3x2xi32, #tpu.memory_space<smem>>) -> (i32, i32) {
    %c0_i32 = arith.constant 0 : i32
    %c0_i32_0 = arith.constant 0 : i32
    %c0_i32_1 = arith.constant 0 : i32
    return %c0_i32, %c0_i32_0 : i32, i32
  }
  func.func @transform_5(%arg0: i32, %arg1: memref<3x2xi32, #tpu.memory_space<smem>>) -> (i32, i32) {
    %c0_i32 = arith.constant 0 : i32
    %c0_i32_0 = arith.constant 0 : i32
    %c0_i32_1 = arith.constant 0 : i32
    return %c0_i32, %c0_i32_0 : i32, i32
  }
  func.func @transform_6(%arg0: i32, %arg1: memref<3x2xi32, #tpu.memory_space<smem>>) -> (i32, i32, i32, i32) {
    %c0_i32 = arith.constant 0 : i32
    %c0_i32_0 = arith.constant 0 : i32
    %c0_i32_1 = arith.constant 0 : i32
    %c0_i32_2 = arith.constant 0 : i32
    return %c0_i32, %arg0, %c0_i32_0, %c0_i32_1 : i32, i32, i32, i32
  }
}

</mosaic_0001>

<llo_original>
// kernel: model_forward.1
$region0: #{model_forward.1}
  #allocation0 [shape = 'u32[]', space=smem, size = 0x4, offset = 0x4, fixed_abs, tag = 'smem constant byte address 0x4 - core index']
  #allocation1 [shape = 'u32[144,128]{1,0:T(1,128)}', space=vmem, size = 0x12000, scoped, tag = 'internal scratch']
  #allocation2 [shape = 's32[1]{0}', space=sflag, size = 0x4, scoped, tag = 'scoped memory for model_forward.1']
  #allocation3 [shape = 'u8[2048]{0}', space=smem, size = 0x800, scoped, tag = 'prefetched SMEM operand 0']
  %s0 = inlined_call_operand.vmem [shape: s32[3,2], index: 0, kind: input, shape index: {}]
  %s1 = inlined_call_operand.vmem [shape: f32[7,2,8,256], index: 1, kind: input, shape index: {}]
  %s2 = inlined_call_operand.vmem [shape: f32[32,8], index: 2, kind: input, shape index: {}]
  %s3 = inlined_call_operand.vmem [shape: f32[32,32], index: 3, kind: input, shape index: {}]
  %s4 = inlined_call_operand.vmem [shape: f32[32,1], index: 4, kind: input, shape index: {}]
  %s5 = inlined_call_operand.vmem [shape: f32[8,32], index: 5, kind: input, shape index: {}]
  %s6 = inlined_call_operand.vmem [shape: f32[8,1], index: 6, kind: input, shape index: {}]
  %s7 = inlined_call_operand.vmem [shape: f32[7,2,8,256], index: 7, kind: output, shape index: {}]
  %s8 = sld [smem:[#allocation0]]
  $region99: #{model_forward.1} parent=0
    _
  %s10 = ssub.s32 1, %s8
  %s11 = scalar_select 0, %s10, %s8
  %s12 = sshll.u32 %s0, 4
  %s13 = int_to_ptr.vmem [resolvable:$true] %s12
  %15 = dma.vmem_to_smem %s13, 64, [#allocation3], [#allocation2]
  %16 = dma.done [#allocation2], 64
  %17 = sfence
  $region1: #{model_forward.1} parent=0
    #allocation4 [shape = 'u8[114688]{0}', space=vmem, size = 0x1c000, scoped, tag = 'input window, operand 1']
    #allocation5 [shape = 'u8[114688]{0}', space=vmem, size = 0x1c000, scoped, tag = 'output window, operand 0']
    loop: start=0, step=1, limit=4
    $region2: #{model_forward.1} parent=1 // loop_pre_header
      _
    $region3: #{model_forward.1} parent=1 // loop_header
      %s19 = sphi 0, %s23
      %p20 = scmp.ge.s32.totalorder %s19, 4
      %s29 = sphi 0, %s31
      %s32 = sphi 0, %s29
      %s33 = sphi 0, %s32
      %s49 = sphi 0, %s33
      %s53 = sphi 0, %s53
      %s55 = sphi 0, %s53
      %s56 = sphi 0, %s55
      %s70 = sphi 0, %s56
      %s74 = sphi 0, %s74
      %s76 = sphi 0, %s74
      %s77 = sphi 0, %s76
      %s91 = sphi 0, %s77
      %s95 = sphi 0, %s95
      %s97 = sphi 0, %s95
      %s98 = sphi 0, %s97
      %s112 = sphi 0, %s98
      %s116 = sphi 0, %s116
      %s118 = sphi 0, %s116
      %s119 = sphi 0, %s118
      %s133 = sphi 0, %s119
      %s137 = sphi 0, %s137
      %s139 = sphi 0, %s137
      %s140 = sphi 0, %s139
      %s154 = sphi 0, %s140
      %s160 = sphi 0, %s162
      %s163 = sphi 0, %s160
      %s164 = sphi 0, %s163
      %s180 = sphi 0, %s164
    $region4: #{model_forward.1} parent=1 // loop_header_branch
      %22 = sbr.rel (%p20) target = $region8
    $region5: #{model_forward.1} parent=1 // loop_body
      %s24 = ssub.s32 %s19, 1
      %s25 = ssub.s32 %s19, 2
      %s26 = sadd.s32 %s19, 1
      %s27 = ssub.s32 %s19, %s26
      %p28 = scmp.eq.s32.totalorder %s27, 0
      %s30 = sadd.s32 %s29, 1
      %s31 = scalar_select %p28, %s29, %s30
      %p34 = pneg %p28
      %p35 = scmp.eq.s32.totalorder %s19, 1
      %p36 = por %p34, %p35
      %p37 = scmp.ne.s32.totalorder %s29, %s32
      %p38 = scmp.eq.s32.totalorder %s19, 0
      %p39 = por %p37, %p38
      %p40 = scmp.ne.s32.totalorder %s29, %s32
      %p41 = scmp.eq.s32.totalorder %s24, 1
      %p42 = por %p40, %p41
      %p43 = scmp.ne.s32.totalorder %s32, %s33
      %p44 = scmp.eq.s32.totalorder %s24, 0
      %p45 = por %p43, %p44
      %p46 = scmp.ne.s32.totalorder %s32, %s33
      %p47 = scmp.eq.s32.totalorder %s25, 1
      %p48 = por %p46, %p47
      %p50 = scmp.ne.s32.totalorder %s33, %s49
      %p51 = scmp.eq.s32.totalorder %s25, 0
      %p52 = por %p50, %p51
      %s54 = sadd.s32 %s53, 1
      %p57 = scmp.eq.s32.totalorder %s19, 1
      %p58 = scmp.ne.s32.totalorder %s53, %s55
      %p59 = scmp.eq.s32.totalorder %s19, 0
      %p60 = por %p58, %p59
      %p61 = scmp.ne.s32.totalorder %s53, %s55
      %p62 = scmp.eq.s32.totalorder %s24, 1
      %p63 = por %p61, %p62
      %p64 = scmp.ne.s32.totalorder %s55, %s56
      %p65 = scmp.eq.s32.totalorder %s24, 0
      %p66 = por %p64, %p65
      %p67 = scmp.ne.s32.totalorder %s55, %s56
      %p68 = scmp.eq.s32.totalorder %s25, 1
      %p69 = por %p67, %p68
      %p71 = scmp.ne.s32.totalorder %s56, %s70
      %p72 = scmp.eq.s32.totalorder %s25, 0
      %p73 = por %p71, %p72
      %s75 = sadd.s32 %s74, 1
      %p78 = scmp.eq.s32.totalorder %s19, 1
      %p79 = scmp.ne.s32.totalorder %s74, %s76
      %p80 = scmp.eq.s32.totalorder %s19, 0
      %p81 = por %p79, %p80
      %p82 = scmp.ne.s32.totalorder %s74, %s76
      %p83 = scmp.eq.s32.totalorder %s24, 1
      %p84 = por %p82, %p83
      %p85 = scmp.ne.s32.totalorder %s76, %s77
      %p86 = scmp.eq.s32.totalorder %s24, 0
      %p87 = por %p85, %p86
      %p88 = scmp.ne.s32.totalorder %s76, %s77
      %p89 = scmp.eq.s32.totalorder %s25, 1
      %p90 = por %p88, %p89
      %p92 = scmp.ne.s32.totalorder %s77, %s91
      %p93 = scmp.eq.s32.totalorder %s25, 0
      %p94 = por %p92, %p93
      %s96 = sadd.s32 %s95, 1
      %p99 = scmp.eq.s32.totalorder %s19, 1
      %p100 = scmp.ne.s32.totalorder %s95, %s97
      %p101 = scmp.eq.s32.totalorder %s19, 0
      %p102 = por %p100, %p101
      %p103 = scmp.ne.s32.totalorder %s95, %s97
      %p104 = scmp.eq.s32.totalorder %s24, 1
      %p105 = por %p103, %p104
      %p106 = scmp.ne.s32.totalorder %s97, %s98
      %p107 = scmp.eq.s32.totalorder %s24, 0
      %p108 = por %p106, %p107
      %p109 = scmp.ne.s32.totalorder %s97, %s98
      %p110 = scmp.eq.s32.totalorder %s25, 1
      %p111 = por %p109, %p110
      %p113 = scmp.ne.s32.totalorder %s98, %s112
      %p114 = scmp.eq.s32.totalorder %s25, 0
      %p115 = por %p113, %p114
      %s117 = sadd.s32 %s116, 1
      %p120 = scmp.eq.s32.totalorder %s19, 1
      %p121 = scmp.ne.s32.totalorder %s116, %s118
      %p122 = scmp.eq.s32.totalorder %s19, 0
      %p123 = por %p121, %p122
      %p124 = scmp.ne.s32.totalorder %s116, %s118
      %p125 = scmp.eq.s32.totalorder %s24, 1
      %p126 = por %p124, %p125
      %p127 = scmp.ne.s32.totalorder %s118, %s119
      %p128 = scmp.eq.s32.totalorder %s24, 0
      %p129 = por %p127, %p128
      %p130 = scmp.ne.s32.totalorder %s118, %s119
      %p131 = scmp.eq.s32.totalorder %s25, 1
      %p132 = por %p130, %p131
      %p134 = scmp.ne.s32.totalorder %s119, %s133
      %p135 = scmp.eq.s32.totalorder %s25, 0
      %p136 = por %p134, %p135
      %s138 = sadd.s32 %s137, 1
      %p141 = scmp.eq.s32.totalorder %s19, 1
      %p142 = scmp.ne.s32.totalorder %s137, %s139
      %p143 = scmp.eq.s32.totalorder %s19, 0
      %p144 = por %p142, %p143
      %p145 = scmp.ne.s32.totalorder %s137, %s139
      %p146 = scmp.eq.s32.totalorder %s24, 1
      %p147 = por %p145, %p146
      %p148 = scmp.ne.s32.totalorder %s139, %s140
      %p149 = scmp.eq.s32.totalorder %s24, 0
      %p150 = por %p148, %p149
      %p151 = scmp.ne.s32.totalorder %s139, %s140
      %p152 = scmp.eq.s32.totalorder %s25, 1
      %p153 = por %p151, %p152
      %p155 = scmp.ne.s32.totalorder %s140, %s154
      %p156 = scmp.eq.s32.totalorder %s25, 0
      %p157 = por %p155, %p156
      %s158 = ssub.s32 %s19, %s26
      %p159 = scmp.eq.s32.totalorder %s158, 0
      %s161 = sadd.s32 %s160, 1
      %s162 = scalar_select %p159, %s160, %s161
      %p165 = pneg %p159
      %p166 = scmp.eq.s32.totalorder %s19, 1
      %p167 = por %p165, %p166
      %p168 = scmp.ne.s32.totalorder %s160, %s163
      %p169 = scmp.eq.s32.totalorder %s19, 0
      %p170 = por %p168, %p169
      %p171 = scmp.ne.s32.totalorder %s160, %s163
      %p172 = scmp.eq.s32.totalorder %s24, 1
      %p173 = por %p171, %p172
      %p174 = scmp.ne.s32.totalorder %s163, %s164
      %p175 = scmp.eq.s32.totalorder %s24, 0
      %p176 = por %p174, %p175
      %p177 = scmp.ne.s32.totalorder %s163, %s164
      %p178 = scmp.eq.s32.totalorder %s25, 1
      %p179 = por %p177, %p178
      %p181 = scmp.ne.s32.totalorder %s164, %s180
      %p182 = scmp.eq.s32.totalorder %s25, 0
      %p183 = por %p181, %p182
      %p184 = scmp.le.s32.totalorder 1, %s19
      %p185 = scmp.lt.s32.totalorder %s19, 3
      %p186 = pnand %p184, %p185
      %p187 = pneg %p186
      // Predicated region
      $region9: #{model_forward.1} parent=5 // pred_check
        _
      $region10: #{model_forward.1} parent=5 // pred_check_branch
        %189 = sbr.rel (%p186) target = $region12
      $region11: #{model_forward.1} parent=5 // pred_region
        %s190 = ssub.s32 %s19, 1
        // Predicated region
        $region13: #{model_forward.1} parent=11 // pred_check
          %p191 = pneg %p66
        $region14: #{model_forward.1} parent=11 // pred_check_branch
          %193 = sbr.rel (%p191) target = $region16
        $region15: #{model_forward.1} parent=11 // pred_region
          _
        $region16: #{model_forward.1} parent=11 // pred_fallthru
          _
        // Predicated region
        $region17: #{model_forward.1} parent=11 // pred_check
          %p194 = pneg %p87
        $region18: #{model_forward.1} parent=11 // pred_check_branch
          %196 = sbr.rel (%p194) target = $region20
        $region19: #{model_forward.1} parent=11 // pred_region
          _
        $region20: #{model_forward.1} parent=11 // pred_fallthru
          _
        // Predicated region
        $region21: #{model_forward.1} parent=11 // pred_check
          %p197 = pneg %p108
        $region22: #{model_forward.1} parent=11 // pred_check_branch
          %199 = sbr.rel (%p197) target = $region24
        $region23: #{model_forward.1} parent=11 // pred_region
          _
        $region24: #{model_forward.1} parent=11 // pred_fallthru
          _
        // Predicated region
        $region25: #{model_forward.1} parent=11 // pred_check
          %p200 = pneg %p129
        $region26: #{model_forward.1} parent=11 // pred_check_branch
          %202 = sbr.rel (%p200) target = $region28
        $region27: #{model_forward.1} parent=11 // pred_region
          _
        $region28: #{model_forward.1} parent=11 // pred_fallthru
          _
        // Predicated region
        $region29: #{model_forward.1} parent=11 // pred_check
          %p203 = pneg %p150
        $region30: #{model_forward.1} parent=11 // pred_check_branch
          %205 = sbr.rel (%p203) target = $region32
        $region31: #{model_forward.1} parent=11 // pred_region
          _
        $region32: #{model_forward.1} parent=11 // pred_fallthru
          _
      $region12: #{model_forward.1} parent=5 // pred_fallthru
        _
      %p206 = scmp.lt.s32.totalorder %s19, 2
      // Predicated region
      $region33: #{model_forward.1} parent=5 // pred_check
        %p207 = pneg %p206
      $region34: #{model_forward.1} parent=5 // pred_check_branch
        %209 = sbr.rel (%p207) target = $region36
      $region35: #{model_forward.1} parent=5 // pred_region
        // Predicated region
        $region37: #{model_forward.1} parent=35 // pred_check
          %p210 = pneg %p39
        $region38: #{model_forward.1} parent=35 // pred_check_branch
          %212 = sbr.rel (%p210) target = $region40
        $region39: #{model_forward.1} parent=35 // pred_region
          %s213 = sand.u32 %s29, 1
          %s214 = sand.u32 %s29, 1
          %s215 = smul.addr %s214, 112
          %s216 = scalar_lea.vmem [#allocation4], %s215
          %s217 = smul.addr %s19, 2
          %s218 = smul.addr %s217, 8
          %s219 = scalar_lea.vmem %s1, %s218
          // Predicated region
          $region41: #{model_forward.1} parent=39 // pred_check
            _
          $region42: #{model_forward.1} parent=39 // pred_check_branch
            %221 = sbr.rel (0) target = $region44
          $region43: #{model_forward.1} parent=39 // pred_region
            // Predicated region
            $region45: #{model_forward.1} parent=43 // pred_check
              _
            $region46: #{model_forward.1} parent=43 // pred_check_branch
              %223 = sbr.rel (0) target = $region48
            $region47: #{model_forward.1} parent=43 // pred_region
              loop: start=0, step=1, limit=1
              $region49: #{model_forward.1} parent=47 // loop_pre_header
                _
              $region50: #{model_forward.1} parent=47 // loop_header
                %s225 = sphi 0, %s229
                %p226 = scmp.ge.s32.totalorder %s225, 1
                %s230 = sphi %s219, %s219
                %s231 = sphi %s216, %s216
              $region51: #{model_forward.1} parent=47 // loop_header_branch
                %228 = sbr.rel (%p226) target = $region55
              $region52: #{model_forward.1} parent=47 // loop_body
                %v232 = vld [vmem:[%s230] sm:$0xff]
                %233 = vst [vmem:[%s231] sm:$0xff] %v232
                %v234 = vld [vmem:[%s230 + $0x8] sm:$0xff]
                %235 = vst [vmem:[%s231 + $0x8] sm:$0xff] %v234
                %v236 = vld [vmem:[%s230 + $0x20] sm:$0xff]
                %237 = vst [vmem:[%s231 + $0x10] sm:$0xff] %v236
                %v238 = vld [vmem:[%s230 + $0x28] sm:$0xff]
                %239 = vst [vmem:[%s231 + $0x18] sm:$0xff] %v238
                %v240 = vld [vmem:[%s230 + $0x40] sm:$0xff]
                %241 = vst [vmem:[%s231 + $0x20] sm:$0xff] %v240
                %v242 = vld [vmem:[%s230 + $0x48] sm:$0xff]
                %243 = vst [vmem:[%s231 + $0x28] sm:$0xff] %v242
                %v244 = vld [vmem:[%s230 + $0x60] sm:$0xff]
                %245 = vst [vmem:[%s231 + $0x30] sm:$0xff] %v244
                %v246 = vld [vmem:[%s230 + $0x68] sm:$0xff]
                %247 = vst [vmem:[%s231 + $0x38] sm:$0xff] %v246
                %v248 = vld [vmem:[%s230 + $0x80] sm:$0xff]
                %249 = vst [vmem:[%s231 + $0x40] sm:$0xff] %v248
                %v250 = vld [vmem:[%s230 + $0x88] sm:$0xff]
                %251 = vst [vmem:[%s231 + $0x48] sm:$0xff] %v250
                %v252 = vld [vmem:[%s230 + $0xa0] sm:$0xff]
                %253 = vst [vmem:[%s231 + $0x50] sm:$0xff] %v252
                %v254 = vld [vmem:[%s230 + $0xa8] sm:$0xff]
                %255 = vst [vmem:[%s231 + $0x58] sm:$0xff] %v254
                %v256 = vld [vmem:[%s230 + $0xc0] sm:$0xff]
                %257 = vst [vmem:[%s231 + $0x60] sm:$0xff] %v256
                %v258 = vld [vmem:[%s230 + $0xc8] sm:$0xff]
                %259 = vst [vmem:[%s231 + $0x68] sm:$0xff] %v258
              $region53: #{model_forward.1} parent=47 // loop_footer
                %s229 = sadd.s32 1, %s225
              $region54: #{model_forward.1} parent=47 // loop_footer_branch
                %224 = sbr.rel target = $region50
              $region55: #{model_forward.1} parent=47 // loop_exit
                _
            $region48: #{model_forward.1} parent=43 // pred_fallthru
              _
            // Predicated region
            $region56: #{model_forward.1} parent=43 // pred_check
              _
            $region57: #{model_forward.1} parent=43 // pred_check_branch
              %261 = sbr.rel target = $region59
            $region58: #{model_forward.1} parent=43 // pred_region
              _
            $region59: #{model_forward.1} parent=43 // pred_fallthru
              _
          $region44: #{model_forward.1} parent=39 // pred_fallthru
            _
          %262 = vnop
        $region40: #{model_forward.1} parent=35 // pred_fallthru
          _
      $region36: #{model_forward.1} parent=5 // pred_fallthru
        _
      %p263 = scmp.le.s32.totalorder 1, %s19
      %p264 = scmp.lt.s32.totalorder %s19, 3
      %p265 = pnand %p263, %p264
      %p266 = pneg %p265
      // Predicated region
      $region60: #{model_forward.1} parent=5 // pred_check
        _
      $region61: #{model_forward.1} parent=5 // pred_check_branch
        %268 = sbr.rel (%p265) target = $region63
      $region62: #{model_forward.1} parent=5 // pred_region
        %s269 = ssub.s32 %s19, 1
        %s270 = sand.u32 %s32, 1
        %s271 = sand.u32 %s32, 1
        %s272 = smul.addr %s271, 112
        %s273 = scalar_lea.vmem [#allocation4], %s272
        // Predicated region
        $region64: #{model_forward.1} parent=62 // pred_check
          %p274 = pneg %p45
        $region65: #{model_forward.1} parent=62 // pred_check_branch
          %276 = sbr.rel (%p274) target = $region67
        $region66: #{model_forward.1} parent=62 // pred_region
          _
        $region67: #{model_forward.1} parent=62 // pred_fallthru
          _
        %s277 = sand.u32 %s32, 1
        %s278 = sand.u32 %s32, 1
        %s279 = smul.addr %s278, 112
        %s280 = scalar_lea.vmem [#allocation4], %s279
        %p281 = pneg %p45
        %p282 = pneg %p42
        %p283 = pneg %p66
        %p284 = pneg %p63
        %p285 = pneg %p87
        %p286 = pneg %p84
        %p287 = pneg %p108
        %p288 = pneg %p105
        %p289 = pneg %p129
        %p290 = pneg %p126
        %p291 = pneg %p150
        %p292 = pneg %p147
        %p293 = pneg %p176
        %p294 = pneg %p173
        %s295 = sand.u32 %s163, 1
        %s296 = sand.u32 %s163, 1
        %s297 = smul.addr %s296, 112
        %s298 = scalar_lea.vmem [#allocation5], %s297
        %v299 = vld [vmem:[%s4] sm:$0xff]
        %v300 = vld [vmem:[%s4 + $0x8] sm:$0xff]
        %v301 = vld [vmem:[%s4 + $0x10] sm:$0xff]
        %v302 = vld [vmem:[%s4 + $0x18] sm:$0xff]
        %304 = vset.pattern.permute.xlu0 0
        %305 = vperm.xlu0 %304, %v299
        %v306 = vpop.permute.xlu0 %305
        %309 = vset.pattern.permute.xlu0 0
        %310 = vperm.xlu0 %309, %v300
        %v311 = vpop.permute.xlu0 %310
        %314 = vset.pattern.permute.xlu0 0
        %315 = vperm.xlu0 %314, %v301
        %v316 = vpop.permute.xlu0 %315
        %319 = vset.pattern.permute.xlu0 0
        %320 = vperm.xlu0 %319, %v302
        %v321 = vpop.permute.xlu0 %320
        %v323 = vld [vmem:[%s6] sm:$0xff]
        %325 = vset.pattern.permute.xlu0 0
        %326 = vperm.xlu0 %325, %v323
        %v327 = vpop.permute.xlu0 %326
        %v329 = vld [vmem:[%s273] sm:$0xff]
        %v330 = vld [vmem:[%s273 + $0x8] sm:$0xff]
        %v331 = vld [vmem:[%s2] sm:$0xff]
        %v332 = vld [vmem:[%s2 + $0x8] sm:$0xff]
        %v333 = vld [vmem:[%s2 + $0x10] sm:$0xff]
        %v334 = vld [vmem:[%s2 + $0x18] sm:$0xff]
        %v335 = vld [vmem:[%s3] sm:$0xff]
        %v336 = vld [vmem:[%s3 + $0x8] sm:$0xff]
        %v337 = vld [vmem:[%s3 + $0x10] sm:$0xff]
        %v338 = vld [vmem:[%s3 + $0x18] sm:$0xff]
        %vm339 = vcmask 261120
        %v341 = vsel %vm339, %v335, 0
        %v344 = vsel %vm339, %v336, 0
        %v347 = vsel %vm339, %v337, 0
        %v350 = vsel %vm339, %v338, 0
        %352 = vmatprep.subr.mxu0 0.0
        %353 = vmatpush1.msra.mxu0 0.0
        %354 = vmatprep.subr.mxu0 0.0
        %355 = vmatpush1.msra.mxu0 0.0
        %356 = vmatprep.subr.mxu0 0.0
        %357 = vmatpush1.msra.mxu0 0.0
        %358 = vmatprep.subr.mxu0 0.0
        %359 = vmatpush1.msra.mxu0 0.0
        %360 = vmatprep.subr.mxu0 0.0
        %361 = vmatpush1.msra.mxu0 0.0
        %362 = vmatprep.subr.mxu0 0.0
        %363 = vmatpush1.msra.mxu0 0.0
        %364 = vmatprep.subr.mxu0 0.0
        %365 = vmatpush1.msra.mxu0 0.0
        %366 = vmatprep.subr.mxu0 0.0
        %367 = vmatpush1.msra.mxu0 0.0
        %368 = vmatprep.subr.mxu0 0.0
        %369 = vmatpush1.msra.mxu0 0.0
        %370 = vmatprep.subr.mxu0 0.0
        %371 = vmatpush1.msra.mxu0 0.0
        %372 = vmatprep.subr.mxu0 0.0
        %373 = vmatpush1.msra.mxu0 0.0
        %374 = vmatprep.subr.mxu0 0.0
        %375 = vmatpush1.msra.mxu0 0.0
        %376 = vmatprep.subr.mxu0 0.0
        %377 = vmatpush1.msra.mxu0 0.0
        %378 = vmatprep.subr.mxu0 0.0
        %379 = vmatpush1.msra.mxu0 0.0
        %380 = vmatprep.subr.mxu0 0.0
        %381 = vmatpush1.msra.mxu0 0.0
        %382 = vmatprep.subr.mxu0 0.0
        %383 = vmatpush1.msra.mxu0 0.0
        %384 = vmatprep.subr.mxu0 0.0
        %385 = vmatpush2.msra.mxu0 0.0
        %386 = vmatprep.subr.mxu0 0.0
        %387 = vmatpush2.msra.mxu0 0.0
        %388 = vmatprep.subr.mxu0 0.0
        %389 = vmatpush2.msra.mxu0 0.0
        %390 = vmatprep.subr.mxu0 0.0
        %391 = vmatpush2.msra.mxu0 0.0
        %392 = vmatprep.subr.mxu0 0.0
        %393 = vmatpush2.msra.mxu0 0.0
        %394 = vmatprep.subr.mxu0 0.0
        %395 = vmatpush2.msra.mxu0 0.0
        %396 = vmatprep.subr.mxu0 0.0
        %397 = vmatpush2.msra.mxu0 0.0
        %398 = vmatprep.subr.mxu0 0.0
        %399 = vmatpush2.msra.mxu0 0.0
        %400 = vmatprep.subr.mxu0 0.0
        %401 = vmatpush2.msra.mxu0 0.0
        %402 = vmatprep.subr.mxu0 0.0
        %403 = vmatpush2.msra.mxu0 0.0
        %404 = vmatprep.subr.mxu0 0.0
        %405 = vmatpush2.msra.mxu0 0.0
        %406 = vmatprep.subr.mxu0 0.0
        %407 = vmatpush2.msra.mxu0 0.0
        %408 = vmatprep.subr.mxu0 0.0
        %409 = vmatpush2.msra.mxu0 0.0
        %410 = vmatprep.subr.mxu0 0.0
        %411 = vmatpush2.msra.mxu0 0.0
        %412 = vmatprep.subr.mxu0 0.0
        %413 = vmatpush2.msra.mxu0 0.0
        %414 = vmatprep.subr.mxu0 0.0
        %415 = vmatpush2.msra.mxu0 0.0
        %416 = vmatprep.mubr.f32.mxu0 0.0
        %417 = vmatmul.mubr.f32.gmra.mxu0 %v341
        %v418 = vpop.f32.mrf.mxu0
        %v419 = vadd.f32 0.0, %v418
        %v420 = vpop.f32.mrf.mxu0
        %v421 = vadd.f32 0.0, %v420
        %422 = vmatprep.mubr.f32.mxu0 0.0
        %423 = vmatmul.mubr.f32.gmra.mxu0 %v344
        %v424 = vpop.f32.mrf.mxu0
        %v425 = vadd.f32 0.0, %v424
        %v426 = vpop.f32.mrf.mxu0
        %v427 = vadd.f32 0.0, %v426
        %428 = vmatprep.mubr.f32.mxu0 0.0
        %429 = vmatmul.mubr.f32.gmra.mxu0 %v347
        %v430 = vpop.f32.mrf.mxu0
        %v431 = vadd.f32 0.0, %v430
        %v432 = vpop.f32.mrf.mxu0
        %v433 = vadd.f32 0.0, %v432
        %434 = vmatprep.mubr.f32.mxu0 0.0
        %435 = vmatmul.mubr.f32.gmra.mxu0 %v350
        %v436 = vpop.f32.mrf.mxu0
        %v437 = vadd.f32 0.0, %v436
        %v438 = vpop.f32.mrf.mxu0
        %v439 = vadd.f32 0.0, %v438
        %440 = vdwg.mxu0
        %vm441 = vcmask 64512
        %v443 = vsel %vm441, %v331, 0
        %v446 = vsel %vm441, %v332, 0
        %v449 = vsel %vm441, %v333, 0
        %v452 = vsel %vm441, %v334, 0
        %454 = vmatprep.subr.mxu0 0.0
        %455 = vmatpush1.msra.mxu0 0.0
        %456 = vmatprep.subr.mxu0 0.0
        %457 = vmatpush1.msra.mxu0 0.0
        %458 = vmatprep.subr.mxu0 0.0
        %459 = vmatpush1.msra.mxu0 0.0
        %460 = vmatprep.subr.mxu0 0.0
        %461 = vmatpush1.msra.mxu0 0.0
        %462 = vmatprep.subr.mxu0 0.0
        %463 = vmatpush1.msra.mxu0 0.0
        %464 = vmatprep.subr.mxu0 0.0
        %465 = vmatpush1.msra.mxu0 0.0
        %466 = vmatprep.subr.mxu0 0.0
        %467 = vmatpush1.msra.mxu0 0.0
        %468 = vmatprep.subr.mxu0 0.0
        %469 = vmatpush1.msra.mxu0 0.0
        %470 = vmatprep.subr.mxu0 0.0
        %471 = vmatpush1.msra.mxu0 0.0
        %472 = vmatprep.subr.mxu0 0.0
        %473 = vmatpush1.msra.mxu0 0.0
        %474 = vmatprep.subr.mxu0 0.0
        %475 = vmatpush1.msra.mxu0 0.0
        %476 = vmatprep.subr.mxu0 0.0
        %477 = vmatpush1.msra.mxu0 0.0
        %478 = vmatprep.subr.mxu0 0.0
        %479 = vmatpush1.msra.mxu0 0.0
        %480 = vmatprep.subr.mxu0 0.0
        %481 = vmatpush1.msra.mxu0 0.0
        %482 = vmatprep.subr.mxu0 0.0
        %483 = vmatpush1.msra.mxu0 0.0
        %484 = vmatprep.subr.mxu0 %v330
        %485 = vmatpush1.msra.mxu0 %v329
        %486 = vmatprep.subr.mxu0 0.0
        %487 = vmatpush2.msra.mxu0 0.0
        %488 = vmatprep.subr.mxu0 0.0
        %489 = vmatpush2.msra.mxu0 0.0
        %490 = vmatprep.subr.mxu0 0.0
        %491 = vmatpush2.msra.mxu0 0.0
        %492 = vmatprep.subr.mxu0 0.0
        %493 = vmatpush2.msra.mxu0 0.0
        %494 = vmatprep.subr.mxu0 0.0
        %495 = vmatpush2.msra.mxu0 0.0
        %496 = vmatprep.subr.mxu0 0.0
        %497 = vmatpush2.msra.mxu0 0.0
        %498 = vmatprep.subr.mxu0 0.0
        %499 = vmatpush2.msra.mxu0 0.0
        %500 = vmatprep.subr.mxu0 0.0
        %501 = vmatpush2.msra.mxu0 0.0
        %502 = vmatprep.subr.mxu0 0.0
        %503 = vmatpush2.msra.mxu0 0.0
        %504 = vmatprep.subr.mxu0 0.0
        %505 = vmatpush2.msra.mxu0 0.0
        %506 = vmatprep.subr.mxu0 0.0
        %507 = vmatpush2.msra.mxu0 0.0
        %508 = vmatprep.subr.mxu0 0.0
        %509 = vmatpush2.msra.mxu0 0.0
        %510 = vmatprep.subr.mxu0 0.0
        %511 = vmatpush2.msra.mxu0 0.0
        %512 = vmatprep.subr.mxu0 0.0
        %513 = vmatpush2.msra.mxu0 0.0
        %514 = vmatprep.subr.mxu0 0.0
        %515 = vmatpush2.msra.mxu0 0.0
        %516 = vmatprep.subr.mxu0 0.0
        %517 = vmatpush2.msra.mxu0 0.0
        %518 = vmatprep.mubr.f32.mxu0 0.0
        %519 = vmatmul.mubr.f32.gmra.mxu0 %v443
        %v520 = vpop.f32.mrf.mxu0
        %v521 = vadd.f32 %v419, %v520
        %v522 = vpop.f32.mrf.mxu0
        %v523 = vadd.f32 %v421, %v522
        %524 = vmatprep.mubr.f32.mxu0 0.0
        %525 = vmatmul.mubr.f32.gmra.mxu0 %v446
        %v526 = vpop.f32.mrf.mxu0
        %v527 = vadd.f32 %v425, %v526
        %v528 = vpop.f32.mrf.mxu0
        %v529 = vadd.f32 %v427, %v528
        %530 = vmatprep.mubr.f32.mxu0 0.0
        %531 = vmatmul.mubr.f32.gmra.mxu0 %v449
        %v532 = vpop.f32.mrf.mxu0
        %v533 = vadd.f32 %v431, %v532
        %v534 = vpop.f32.mrf.mxu0
        %v535 = vadd.f32 %v433, %v534
        %536 = vmatprep.mubr.f32.mxu0 0.0
        %537 = vmatmul.mubr.f32.gmra.mxu0 %v452
        %v538 = vpop.f32.mrf.mxu0
        %v539 = vadd.f32 %v437, %v538
        %v540 = vpop.f32.mrf.mxu0
        %v541 = vadd.f32 %v439, %v540
        %542 = vdwg.mxu0
        %v543 = vadd.f32 %v521, %v306
        %v544 = vadd.f32 %v523, %v306
        %v545 = vadd.f32 %v527, %v311
        %v546 = vadd.f32 %v529, %v311
        %v547 = vadd.f32 %v533, %v316
        %v548 = vadd.f32 %v535, %v316
        %v549 = vadd.f32 %v539, %v321
        %v550 = vadd.f32 %v541, %v321
        %v551 = vtanh.pop %v543
        %v552 = vtanh.pop %v544
        %v553 = vtanh.pop %v545
        %v554 = vtanh.pop %v546
        %v555 = vtanh.pop %v547
        %v556 = vtanh.pop %v548
        %v557 = vtanh.pop %v549
        %v558 = vtanh.pop %v550
        %v559 = vld [vmem:[%s5] sm:$0xff]
        %v561 = vsel %vm339, %v559, 0
        %563 = vmatprep.subr.mxu0 0.0
        %564 = vmatpush1.msra.mxu0 0.0
        %565 = vmatprep.subr.mxu0 0.0
        %566 = vmatpush1.msra.mxu0 0.0
        %567 = vmatprep.subr.mxu0 0.0
        %568 = vmatpush1.msra.mxu0 0.0
        %569 = vmatprep.subr.mxu0 0.0
        %570 = vmatpush1.msra.mxu0 0.0
        %571 = vmatprep.subr.mxu0 0.0
        %572 = vmatpush1.msra.mxu0 0.0
        %573 = vmatprep.subr.mxu0 0.0
        %574 = vmatpush1.msra.mxu0 0.0
        %575 = vmatprep.subr.mxu0 0.0
        %576 = vmatpush1.msra.mxu0 0.0
        %577 = vmatprep.subr.mxu0 0.0
        %578 = vmatpush1.msra.mxu0 0.0
        %579 = vmatprep.subr.mxu0 0.0
        %580 = vmatpush1.msra.mxu0 0.0
        %581 = vmatprep.subr.mxu0 0.0
        %582 = vmatpush1.msra.mxu0 0.0
        %583 = vmatprep.subr.mxu0 0.0
        %584 = vmatpush1.msra.mxu0 0.0
        %585 = vmatprep.subr.mxu0 0.0
        %586 = vmatpush1.msra.mxu0 0.0
        %587 = vmatprep.subr.mxu0 %v558
        %588 = vmatpush1.msra.mxu0 %v557
        %589 = vmatprep.subr.mxu0 %v556
        %590 = vmatpush1.msra.mxu0 %v555
        %591 = vmatprep.subr.mxu0 %v554
        %592 = vmatpush1.msra.mxu0 %v553
        %593 = vmatprep.subr.mxu0 %v552
        %594 = vmatpush1.msra.mxu0 %v551
        %595 = vmatprep.subr.mxu0 0.0
        %596 = vmatpush2.msra.mxu0 0.0
        %597 = vmatprep.subr.mxu0 0.0
        %598 = vmatpush2.msra.mxu0 0.0
        %599 = vmatprep.subr.mxu0 0.0
        %600 = vmatpush2.msra.mxu0 0.0
        %601 = vmatprep.subr.mxu0 0.0
        %602 = vmatpush2.msra.mxu0 0.0
        %603 = vmatprep.subr.mxu0 0.0
        %604 = vmatpush2.msra.mxu0 0.0
        %605 = vmatprep.subr.mxu0 0.0
        %606 = vmatpush2.msra.mxu0 0.0
        %607 = vmatprep.subr.mxu0 0.0
        %608 = vmatpush2.msra.mxu0 0.0
        %609 = vmatprep.subr.mxu0 0.0
        %610 = vmatpush2.msra.mxu0 0.0
        %611 = vmatprep.subr.mxu0 0.0
        %612 = vmatpush2.msra.mxu0 0.0
        %613 = vmatprep.subr.mxu0 0.0
        %614 = vmatpush2.msra.mxu0 0.0
        %615 = vmatprep.subr.mxu0 0.0
        %616 = vmatpush2.msra.mxu0 0.0
        %617 = vmatprep.subr.mxu0 0.0
        %618 = vmatpush2.msra.mxu0 0.0
        %619 = vmatprep.subr.mxu0 0.0
        %620 = vmatpush2.msra.mxu0 0.0
        %621 = vmatprep.subr.mxu0 0.0
        %622 = vmatpush2.msra.mxu0 0.0
        %623 = vmatprep.subr.mxu0 0.0
        %624 = vmatpush2.msra.mxu0 0.0
        %625 = vmatprep.subr.mxu0 0.0
        %626 = vmatpush2.msra.mxu0 0.0
        %627 = vmatprep.mubr.f32.mxu0 0.0
        %628 = vmatmul.mubr.f32.gmra.mxu0 %v561
        %v629 = vpop.f32.mrf.mxu0
        %v630 = vadd.f32 %v327, %v629
        %v631 = vpop.f32.mrf.mxu0
        %v632 = vadd.f32 %v327, %v631
        %633 = vdwg.mxu0
        %634 = vst [vmem:[%s298] sm:$0xff] %v630
        %635 = vst [vmem:[%s298 + $0x8] sm:$0xff] %v632
        %s636 = scalar_lea.vmem %s273, 16 [#allocation4]
        %v637 = vld [vmem:[%s636] sm:$0xff]
        %v638 = vld [vmem:[%s636 + $0x8] sm:$0xff]
        %v639 = vld [vmem:[%s2] sm:$0xff]
        %v640 = vld [vmem:[%s2 + $0x8] sm:$0xff]
        %v641 = vld [vmem:[%s2 + $0x10] sm:$0xff]
        %v642 = vld [vmem:[%s2 + $0x18] sm:$0xff]
        %v643 = vld [vmem:[%s3] sm:$0xff]
        %v644 = vld [vmem:[%s3 + $0x8] sm:$0xff]
        %v645 = vld [vmem:[%s3 + $0x10] sm:$0xff]
        %v646 = vld [vmem:[%s3 + $0x18] sm:$0xff]
        %v648 = vsel %vm339, %v643, 0
        %v651 = vsel %vm339, %v644, 0
        %v654 = vsel %vm339, %v645, 0
        %v657 = vsel %vm339, %v646, 0
        %659 = vmatprep.subr.mxu0 0.0
        %660 = vmatpush1.msra.mxu0 0.0
        %661 = vmatprep.subr.mxu0 0.0
        %662 = vmatpush1.msra.mxu0 0.0
        %663 = vmatprep.subr.mxu0 0.0
        %664 = vmatpush1.msra.mxu0 0.0
        %665 = vmatprep.subr.mxu0 0.0
        %666 = vmatpush1.msra.mxu0 0.0
        %667 = vmatprep.subr.mxu0 0.0
        %668 = vmatpush1.msra.mxu0 0.0
        %669 = vmatprep.subr.mxu0 0.0
        %670 = vmatpush1.msra.mxu0 0.0
        %671 = vmatprep.subr.mxu0 0.0
        %672 = vmatpush1.msra.mxu0 0.0
        %673 = vmatprep.subr.mxu0 0.0
        %674 = vmatpush1.msra.mxu0 0.0
        %675 = vmatprep.subr.mxu0 0.0
        %676 = vmatpush1.msra.mxu0 0.0
        %677 = vmatprep.subr.mxu0 0.0
        %678 = vmatpush1.msra.mxu0 0.0
        %679 = vmatprep.subr.mxu0 0.0
        %680 = vmatpush1.msra.mxu0 0.0
        %681 = vmatprep.subr.mxu0 0.0
        %682 = vmatpush1.msra.mxu0 0.0
        %683 = vmatprep.subr.mxu0 %v558
        %684 = vmatpush1.msra.mxu0 %v557
        %685 = vmatprep.subr.mxu0 %v556
        %686 = vmatpush1.msra.mxu0 %v555
        %687 = vmatprep.subr.mxu0 %v554
        %688 = vmatpush1.msra.mxu0 %v553
        %689 = vmatprep.subr.mxu0 %v552
        %690 = vmatpush1.msra.mxu0 %v551
        %691 = vmatprep.subr.mxu0 0.0
        %692 = vmatpush2.msra.mxu0 0.0
        %693 = vmatprep.subr.mxu0 0.0
        %694 = vmatpush2.msra.mxu0 0.0
        %695 = vmatprep.subr.mxu0 0.0
        %696 = vmatpush2.msra.mxu0 0.0
        %697 = vmatprep.subr.mxu0 0.0
        %698 = vmatpush2.msra.mxu0 0.0
        %699 = vmatprep.subr.mxu0 0.0
        %700 = vmatpush2.msra.mxu0 0.0
        %701 = vmatprep.subr.mxu0 0.0
        %702 = vmatpush2.msra.mxu0 0.0
        %703 = vmatprep.subr.mxu0 0.0
        %704 = vmatpush2.msra.mxu0 0.0
        %705 = vmatprep.subr.mxu0 0.0
        %706 = vmatpush2.msra.mxu0 0.0
        %707 = vmatprep.subr.mxu0 0.0
        %708 = vmatpush2.msra.mxu0 0.0
        %709 = vmatprep.subr.mxu0 0.0
        %710 = vmatpush2.msra.mxu0 0.0
        %711 = vmatprep.subr.mxu0 0.0
        %712 = vmatpush2.msra.mxu0 0.0
        %713 = vmatprep.subr.mxu0 0.0
        %714 = vmatpush2.msra.mxu0 0.0
        %715 = vmatprep.subr.mxu0 0.0
        %716 = vmatpush2.msra.mxu0 0.0
        %717 = vmatprep.subr.mxu0 0.0
        %718 = vmatpush2.msra.mxu0 0.0
        %719 = vmatprep.subr.mxu0 0.0
        %720 = vmatpush2.msra.mxu0 0.0
        %721 = vmatprep.subr.mxu0 0.0
        %722 = vmatpush2.msra.mxu0 0.0
        %723 = vmatprep.mubr.f32.mxu0 0.0
        %724 = vmatmul.mubr.f32.gmra.mxu0 %v648
        %v725 = vpop.f32.mrf.mxu0
        %v726 = vadd.f32 0.0, %v725
        %v727 = vpop.f32.mrf.mxu0
        %v728 = vadd.f32 0.0, %v727
        %729 = vmatprep.mubr.f32.mxu0 0.0
        %730 = vmatmul.mubr.f32.gmra.mxu0 %v651
        %v731 = vpop.f32.mrf.mxu0
        %v732 = vadd.f32 0.0, %v731
        %v733 = vpop.f32.mrf.mxu0
        %v734 = vadd.f32 0.0, %v733
        %735 = vmatprep.mubr.f32.mxu0 0.0
        %736 = vmatmul.mubr.f32.gmra.mxu0 %v654
        %v737 = vpop.f32.mrf.mxu0
        %v738 = vadd.f32 0.0, %v737
        %v739 = vpop.f32.mrf.mxu0
        %v740 = vadd.f32 0.0, %v739
        %741 = vmatprep.mubr.f32.mxu0 0.0
        %742 = vmatmul.mubr.f32.gmra.mxu0 %v657
        %v743 = vpop.f32.mrf.mxu0
        %v744 = vadd.f32 0.0, %v743
        %v745 = vpop.f32.mrf.mxu0
        %v746 = vadd.f32 0.0, %v745
        %747 = vdwg.mxu0
        %v749 = vsel %vm441, %v639, 0
        %v752 = vsel %vm441, %v640, 0
        %v755 = vsel %vm441, %v641, 0
        %v758 = vsel %vm441, %v642, 0
        %760 = vmatprep.subr.mxu0 0.0
        %761 = vmatpush1.msra.mxu0 0.0
        %762 = vmatprep.subr.mxu0 0.0
        %763 = vmatpush1.msra.mxu0 0.0
        %764 = vmatprep.subr.mxu0 0.0
        %765 = vmatpush1.msra.mxu0 0.0
        %766 = vmatprep.subr.mxu0 0.0
        %767 = vmatpush1.msra.mxu0 0.0
        %768 = vmatprep.subr.mxu0 0.0
        %769 = vmatpush1.msra.mxu0 0.0
        %770 = vmatprep.subr.mxu0 0.0
        %771 = vmatpush1.msra.mxu0 0.0
        %772 = vmatprep.subr.mxu0 0.0
        %773 = vmatpush1.msra.mxu0 0.0
        %774 = vmatprep.subr.mxu0 0.0
        %775 = vmatpush1.msra.mxu0 0.0
        %776 = vmatprep.subr.mxu0 0.0
        %777 = vmatpush1.msra.mxu0 0.0
        %778 = vmatprep.subr.mxu0 0.0
        %779 = vmatpush1.msra.mxu0 0.0
        %780 = vmatprep.subr.mxu0 0.0
        %781 = vmatpush1.msra.mxu0 0.0
        %782 = vmatprep.subr.mxu0 0.0
        %783 = vmatpush1.msra.mxu0 0.0
        %784 = vmatprep.subr.mxu0 0.0
        %785 = vmatpush1.msra.mxu0 0.0
        %786 = vmatprep.subr.mxu0 0.0
        %787 = vmatpush1.msra.mxu0 0.0
        %788 = vmatprep.subr.mxu0 0.0
        %789 = vmatpush1.msra.mxu0 0.0
        %790 = vmatprep.subr.mxu0 %v638
        %791 = vmatpush1.msra.mxu0 %v637
        %792 = vmatprep.subr.mxu0 0.0
        %793 = vmatpush2.msra.mxu0 0.0
        %794 = vmatprep.subr.mxu0 0.0
        %795 = vmatpush2.msra.mxu0 0.0
        %796 = vmatprep.subr.mxu0 0.0
        %797 = vmatpush2.msra.mxu0 0.0
        %798 = vmatprep.subr.mxu0 0.0
        %799 = vmatpush2.msra.mxu0 0.0
        %800 = vmatprep.subr.mxu0 0.0
        %801 = vmatpush2.msra.mxu0 0.0
        %802 = vmatprep.subr.mxu0 0.0
        %803 = vmatpush2.msra.mxu0 0.0
        %804 = vmatprep.subr.mxu0 0.0
        %805 = vmatpush2.msra.mxu0 0.0
        %806 = vmatprep.subr.mxu0 0.0
        %807 = vmatpush2.msra.mxu0 0.0
        %808 = vmatprep.subr.mxu0 0.0
        %809 = vmatpush2.msra.mxu0 0.0
        %810 = vmatprep.subr.mxu0 0.0
        %811 = vmatpush2.msra.mxu0 0.0
        %812 = vmatprep.subr.mxu0 0.0
        %813 = vmatpush2.msra.mxu0 0.0
        %814 = vmatprep.subr.mxu0 0.0
        %815 = vmatpush2.msra.mxu0 0.0
        %816 = vmatprep.subr.mxu0 0.0
        %817 = vmatpush2.msra.mxu0 0.0
        %818 = vmatprep.subr.mxu0 0.0
        %819 = vmatpush2.msra.mxu0 0.0
        %820 = vmatprep.subr.mxu0 0.0
        %821 = vmatpush2.msra.mxu0 0.0
        %822 = vmatprep.subr.mxu0 0.0
        %823 = vmatpush2.msra.mxu0 0.0
        %824 = vmatprep.mubr.f32.mxu0 0.0
        %825 = vmatmul.mubr.f32.gmra.mxu0 %v749
        %v826 = vpop.f32.mrf.mxu0
        %v827 = vadd.f32 %v726, %v826
        %v828 = vpop.f32.mrf.mxu0
        %v829 = vadd.f32 %v728, %v828
        %830 = vmatprep.mubr.f32.mxu0 0.0
        %831 = vmatmul.mubr.f32.gmra.mxu0 %v752
        %v832 = vpop.f32.mrf.mxu0
        %v833 = vadd.f32 %v732, %v832
        %v834 = vpop.f32.mrf.mxu0
        %v835 = vadd.f32 %v734, %v834
        %836 = vmatprep.mubr.f32.mxu0 0.0
        %837 = vmatmul.mubr.f32.gmra.mxu0 %v755
        %v838 = vpop.f32.mrf.mxu0
        %v839 = vadd.f32 %v738, %v838
        %v840 = vpop.f32.mrf.mxu0
        %v841 = vadd.f32 %v740, %v840
        %842 = vmatprep.mubr.f32.mxu0 0.0
        %843 = vmatmul.mubr.f32.gmra.mxu0 %v758
        %v844 = vpop.f32.mrf.mxu0
        %v845 = vadd.f32 %v744, %v844
        %v846 = vpop.f32.mrf.mxu0
        %v847 = vadd.f32 %v746, %v846
        %848 = vdwg.mxu0
        %v849 = vadd.f32 %v827, %v306
        %v850 = vadd.f32 %v829, %v306
        %v851 = vadd.f32 %v833, %v311
        %v852 = vadd.f32 %v835, %v311
        %v853 = vadd.f32 %v839, %v316
        %v854 = vadd.f32 %v841, %v316
        %v855 = vadd.f32 %v845, %v321
        %v856 = vadd.f32 %v847, %v321
        %v857 = vtanh.pop %v849
        %v858 = vtanh.pop %v850
        %v859 = vtanh.pop %v851
        %v860 = vtanh.pop %v852
        %v861 = vtanh.pop %v853
        %v862 = vtanh.pop %v854
        %v863 = vtanh.pop %v855
        %v864 = vtanh.pop %v856
        %v865 = vld [vmem:[%s5] sm:$0xff]
        %v867 = vsel %vm339, %v865, 0
        %869 = vmatprep.subr.mxu0 0.0
        %870 = vmatpush1.msra.mxu0 0.0
        %871 = vmatprep.subr.mxu0 0.0
        %872 = vmatpush1.msra.mxu0 0.0
        %873 = vmatprep.subr.mxu0 0.0
        %874 = vmatpush1.msra.mxu0 0.0
        %875 = vmatprep.subr.mxu0 0.0
        %876 = vmatpush1.msra.mxu0 0.0
        %877 = vmatprep.subr.mxu0 0.0
        %878 = vmatpush1.msra.mxu0 0.0
        %879 = vmatprep.subr.mxu0 0.0
        %880 = vmatpush1.msra.mxu0 0.0
        %881 = vmatprep.subr.mxu0 0.0
        %882 = vmatpush1.msra.mxu0 0.0
        %883 = vmatprep.subr.mxu0 0.0
        %884 = vmatpush1.msra.mxu0 0.0
        %885 = vmatprep.subr.mxu0 0.0
        %886 = vmatpush1.msra.mxu0 0.0
        %887 = vmatprep.subr.mxu0 0.0
        %888 = vmatpush1.msra.mxu0 0.0
        %889 = vmatprep.subr.mxu0 0.0
        %890 = vmatpush1.msra.mxu0 0.0
        %891 = vmatprep.subr.mxu0 0.0
        %892 = vmatpush1.msra.mxu0 0.0
        %893 = vmatprep.subr.mxu0 %v864
        %894 = vmatpush1.msra.mxu0 %v863
        %895 = vmatprep.subr.mxu0 %v862
        %896 = vmatpush1.msra.mxu0 %v861
        %897 = vmatprep.subr.mxu0 %v860
        %898 = vmatpush1.msra.mxu0 %v859
        %899 = vmatprep.subr.mxu0 %v858
        %900 = vmatpush1.msra.mxu0 %v857
        %901 = vmatprep.subr.mxu0 0.0
        %902 = vmatpush2.msra.mxu0 0.0
        %903 = vmatprep.subr.mxu0 0.0
        %904 = vmatpush2.msra.mxu0 0.0
        %905 = vmatprep.subr.mxu0 0.0
        %906 = vmatpush2.msra.mxu0 0.0
        %907 = vmatprep.subr.mxu0 0.0
        %908 = vmatpush2.msra.mxu0 0.0
        %909 = vmatprep.subr.mxu0 0.0
        %910 = vmatpush2.msra.mxu0 0.0
        %911 = vmatprep.subr.mxu0 0.0
        %912 = vmatpush2.msra.mxu0 0.0
        %913 = vmatprep.subr.mxu0 0.0
        %914 = vmatpush2.msra.mxu0 0.0
        %915 = vmatprep.subr.mxu0 0.0
        %916 = vmatpush2.msra.mxu0 0.0
        %917 = vmatprep.subr.mxu0 0.0
        %918 = vmatpush2.msra.mxu0 0.0
        %919 = vmatprep.subr.mxu0 0.0
        %920 = vmatpush2.msra.mxu0 0.0
        %921 = vmatprep.subr.mxu0 0.0
        %922 = vmatpush2.msra.mxu0 0.0
        %923 = vmatprep.subr.mxu0 0.0
        %924 = vmatpush2.msra.mxu0 0.0
        %925 = vmatprep.subr.mxu0 0.0
        %926 = vmatpush2.msra.mxu0 0.0
        %927 = vmatprep.subr.mxu0 0.0
        %928 = vmatpush2.msra.mxu0 0.0
        %929 = vmatprep.subr.mxu0 0.0
        %930 = vmatpush2.msra.mxu0 0.0
        %931 = vmatprep.subr.mxu0 0.0
        %932 = vmatpush2.msra.mxu0 0.0
        %933 = vmatprep.mubr.f32.mxu0 0.0
        %934 = vmatmul.mubr.f32.gmra.mxu0 %v867
        %v935 = vpop.f32.mrf.mxu0
        %v936 = vadd.f32 %v327, %v935
        %v937 = vpop.f32.mrf.mxu0
        %v938 = vadd.f32 %v327, %v937
        %939 = vdwg.mxu0
        %s940 = scalar_lea.vmem %s298, 16 [#allocation5]
        %941 = vst [vmem:[%s940] sm:$0xff] %v936
        %942 = vst [vmem:[%s940 + $0x8] sm:$0xff] %v938
        %s943 = scalar_lea.vmem %s273, 32 [#allocation4]
        %v944 = vld [vmem:[%s943] sm:$0xff]
        %v945 = vld [vmem:[%s943 + $0x8] sm:$0xff]
        %v946 = vld [vmem:[%s2] sm:$0xff]
        %v947 = vld [vmem:[%s2 + $0x8] sm:$0xff]
        %v948 = vld [vmem:[%s2 + $0x10] sm:$0xff]
        %v949 = vld [vmem:[%s2 + $0x18] sm:$0xff]
        %v950 = vld [vmem:[%s3] sm:$0xff]
        %v951 = vld [vmem:[%s3 + $0x8] sm:$0xff]
        %v952 = vld [vmem:[%s3 + $0x10] sm:$0xff]
        %v953 = vld [vmem:[%s3 + $0x18] sm:$0xff]
        %v955 = vsel %vm339, %v950, 0
        %v958 = vsel %vm339, %v951, 0
        %v961 = vsel %vm339, %v952, 0
        %v964 = vsel %vm339, %v953, 0
        %966 = vmatprep.subr.mxu0 0.0
        %967 = vmatpush1.msra.mxu0 0.0
        %968 = vmatprep.subr.mxu0 0.0
        %969 = vmatpush1.msra.mxu0 0.0
        %970 = vmatprep.subr.mxu0 0.0
        %971 = vmatpush1.msra.mxu0 0.0
        %972 = vmatprep.subr.mxu0 0.0
        %973 = vmatpush1.msra.mxu0 0.0
        %974 = vmatprep.subr.mxu0 0.0
        %975 = vmatpush1.msra.mxu0 0.0
        %976 = vmatprep.subr.mxu0 0.0
        %977 = vmatpush1.msra.mxu0 0.0
        %978 = vmatprep.subr.mxu0 0.0
        %979 = vmatpush1.msra.mxu0 0.0
        %980 = vmatprep.subr.mxu0 0.0
        %981 = vmatpush1.msra.mxu0 0.0
        %982 = vmatprep.subr.mxu0 0.0
        %983 = vmatpush1.msra.mxu0 0.0
        %984 = vmatprep.subr.mxu0 0.0
        %985 = vmatpush1.msra.mxu0 0.0
        %986 = vmatprep.subr.mxu0 0.0
        %987 = vmatpush1.msra.mxu0 0.0
        %988 = vmatprep.subr.mxu0 0.0
        %989 = vmatpush1.msra.mxu0 0.0
        %990 = vmatprep.subr.mxu0 %v864
        %991 = vmatpush1.msra.mxu0 %v863
        %992 = vmatprep.subr.mxu0 %v862
        %993 = vmatpush1.msra.mxu0 %v861
        %994 = vmatprep.subr.mxu0 %v860
        %995 = vmatpush1.msra.mxu0 %v859
        %996 = vmatprep.subr.mxu0 %v858
        %997 = vmatpush1.msra.mxu0 %v857
        %998 = vmatprep.subr.mxu0 0.0
        %999 = vmatpush2.msra.mxu0 0.0
        %1000 = vmatprep.subr.mxu0 0.0
        %1001 = vmatpush2.msra.mxu0 0.0
        %1002 = vmatprep.subr.mxu0 0.0
        %1003 = vmatpush2.msra.mxu0 0.0
        %1004 = vmatprep.subr.mxu0 0.0
        %1005 = vmatpush2.msra.mxu0 0.0
        %1006 = vmatprep.subr.mxu0 0.0
        %1007 = vmatpush2.msra.mxu0 0.0
        %1008 = vmatprep.subr.mxu0 0.0
        %1009 = vmatpush2.msra.mxu0 0.0
        %1010 = vmatprep.subr.mxu0 0.0
        %1011 = vmatpush2.msra.mxu0 0.0
        %1012 = vmatprep.subr.mxu0 0.0
        %1013 = vmatpush2.msra.mxu0 0.0
        %1014 = vmatprep.subr.mxu0 0.0
        %1015 = vmatpush2.msra.mxu0 0.0
        %1016 = vmatprep.subr.mxu0 0.0
        %1017 = vmatpush2.msra.mxu0 0.0
        %1018 = vmatprep.subr.mxu0 0.0
        %1019 = vmatpush2.msra.mxu0 0.0
        %1020 = vmatprep.subr.mxu0 0.0
        %1021 = vmatpush2.msra.mxu0 0.0
        %1022 = vmatprep.subr.mxu0 0.0
        %1023 = vmatpush2.msra.mxu0 0.0
        %1024 = vmatprep.subr.mxu0 0.0
        %1025 = vmatpush2.msra.mxu0 0.0
        %1026 = vmatprep.subr.mxu0 0.0
        %1027 = vmatpush2.msra.mxu0 0.0
        %1028 = vmatprep.subr.mxu0 0.0
        %1029 = vmatpush2.msra.mxu0 0.0
        %1030 = vmatprep.mubr.f32.mxu0 0.0
        %1031 = vmatmul.mubr.f32.gmra.mxu0 %v955
        %v1032 = vpop.f32.mrf.mxu0
        %v1033 = vadd.f32 0.0, %v1032
        %v1034 = vpop.f32.mrf.mxu0
        %v1035 = vadd.f32 0.0, %v1034
        %1036 = vmatprep.mubr.f32.mxu0 0.0
        %1037 = vmatmul.mubr.f32.gmra.mxu0 %v958
        %v1038 = vpop.f32.mrf.mxu0
        %v1039 = vadd.f32 0.0, %v1038
        %v1040 = vpop.f32.mrf.mxu0
        %v1041 = vadd.f32 0.0, %v1040
        %1042 = vmatprep.mubr.f32.mxu0 0.0
        %1043 = vmatmul.mubr.f32.gmra.mxu0 %v961
        %v1044 = vpop.f32.mrf.mxu0
        %v1045 = vadd.f32 0.0, %v1044
        %v1046 = vpop.f32.mrf.mxu0
        %v1047 = vadd.f32 0.0, %v1046
        %1048 = vmatprep.mubr.f32.mxu0 0.0
        %1049 = vmatmul.mubr.f32.gmra.mxu0 %v964
        %v1050 = vpop.f32.mrf.mxu0
        %v1051 = vadd.f32 0.0, %v1050
        %v1052 = vpop.f32.mrf.mxu0
        %v1053 = vadd.f32 0.0, %v1052
        %1054 = vdwg.mxu0
        %v1056 = vsel %vm441, %v946, 0
        %v1059 = vsel %vm441, %v947, 0
        %v1062 = vsel %vm441, %v948, 0
        %v1065 = vsel %vm441, %v949, 0
        %1067 = vmatprep.subr.mxu0 0.0
        %1068 = vmatpush1.msra.mxu0 0.0
        %1069 = vmatprep.subr.mxu0 0.0
        %1070 = vmatpush1.msra.mxu0 0.0
        %1071 = vmatprep.subr.mxu0 0.0
        %1072 = vmatpush1.msra.mxu0 0.0
        %1073 = vmatprep.subr.mxu0 0.0
        %1074 = vmatpush1.msra.mxu0 0.0
        %1075 = vmatprep.subr.mxu0 0.0
        %1076 = vmatpush1.msra.mxu0 0.0
        %1077 = vmatprep.subr.mxu0 0.0
        %1078 = vmatpush1.msra.mxu0 0.0
        %1079 = vmatprep.subr.mxu0 0.0
        %1080 = vmatpush1.msra.mxu0 0.0
        %1081 = vmatprep.subr.mxu0 0.0
        %1082 = vmatpush1.msra.mxu0 0.0
        %1083 = vmatprep.subr.mxu0 0.0
        %1084 = vmatpush1.msra.mxu0 0.0
        %1085 = vmatprep.subr.mxu0 0.0
        %1086 = vmatpush1.msra.mxu0 0.0
        %1087 = vmatprep.subr.mxu0 0.0
        %1088 = vmatpush1.msra.mxu0 0.0
        %1089 = vmatprep.subr.mxu0 0.0
        %1090 = vmatpush1.msra.mxu0 0.0
        %1091 = vmatprep.subr.mxu0 0.0
        %1092 = vmatpush1.msra.mxu0 0.0
        %1093 = vmatprep.subr.mxu0 0.0
        %1094 = vmatpush1.msra.mxu0 0.0
        %1095 = vmatprep.subr.mxu0 0.0
        %1096 = vmatpush1.msra.mxu0 0.0
        %1097 = vmatprep.subr.mxu0 %v945
        %1098 = vmatpush1.msra.mxu0 %v944
        %1099 = vmatprep.subr.mxu0 0.0
        %1100 = vmatpush2.msra.mxu0 0.0
        %1101 = vmatprep.subr.mxu0 0.0
        %1102 = vmatpush2.msra.mxu0 0.0
        %1103 = vmatprep.subr.mxu0 0.0
        %1104 = vmatpush2.msra.mxu0 0.0
        %1105 = vmatprep.subr.mxu0 0.0
        %1106 = vmatpush2.msra.mxu0 0.0
        %1107 = vmatprep.subr.mxu0 0.0
        %1108 = vmatpush2.msra.mxu0 0.0
        %1109 = vmatprep.subr.mxu0 0.0
        %1110 = vmatpush2.msra.mxu0 0.0
        %1111 = vmatprep.subr.mxu0 0.0
        %1112 = vmatpush2.msra.mxu0 0.0
        %1113 = vmatprep.subr.mxu0 0.0
        %1114 = vmatpush2.msra.mxu0 0.0
        %1115 = vmatprep.subr.mxu0 0.0
        %1116 = vmatpush2.msra.mxu0 0.0
        %1117 = vmatprep.subr.mxu0 0.0
        %1118 = vmatpush2.msra.mxu0 0.0
        %1119 = vmatprep.subr.mxu0 0.0
        %1120 = vmatpush2.msra.mxu0 0.0
        %1121 = vmatprep.subr.mxu0 0.0
        %1122 = vmatpush2.msra.mxu0 0.0
        %1123 = vmatprep.subr.mxu0 0.0
        %1124 = vmatpush2.msra.mxu0 0.0
        %1125 = vmatprep.subr.mxu0 0.0
        %1126 = vmatpush2.msra.mxu0 0.0
        %1127 = vmatprep.subr.mxu0 0.0
        %1128 = vmatpush2.msra.mxu0 0.0
        %1129 = vmatprep.subr.mxu0 0.0
        %1130 = vmatpush2.msra.mxu0 0.0
        %1131 = vmatprep.mubr.f32.mxu0 0.0
        %1132 = vmatmul.mubr.f32.gmra.mxu0 %v1056
        %v1133 = vpop.f32.mrf.mxu0
        %v1134 = vadd.f32 %v1033, %v1133
        %v1135 = vpop.f32.mrf.mxu0
        %v1136 = vadd.f32 %v1035, %v1135
        %1137 = vmatprep.mubr.f32.mxu0 0.0
        %1138 = vmatmul.mubr.f32.gmra.mxu0 %v1059
        %v1139 = vpop.f32.mrf.mxu0
        %v1140 = vadd.f32 %v1039, %v1139
        %v1141 = vpop.f32.mrf.mxu0
        %v1142 = vadd.f32 %v1041, %v1141
        %1143 = vmatprep.mubr.f32.mxu0 0.0
        %1144 = vmatmul.mubr.f32.gmra.mxu0 %v1062
        %v1145 = vpop.f32.mrf.mxu0
        %v1146 = vadd.f32 %v1045, %v1145
        %v1147 = vpop.f32.mrf.mxu0
        %v1148 = vadd.f32 %v1047, %v1147
        %1149 = vmatprep.mubr.f32.mxu0 0.0
        %1150 = vmatmul.mubr.f32.gmra.mxu0 %v1065
        %v1151 = vpop.f32.mrf.mxu0
        %v1152 = vadd.f32 %v1051, %v1151
        %v1153 = vpop.f32.mrf.mxu0
        %v1154 = vadd.f32 %v1053, %v1153
        %1155 = vdwg.mxu0
        %v1156 = vadd.f32 %v1134, %v306
        %v1157 = vadd.f32 %v1136, %v306
        %v1158 = vadd.f32 %v1140, %v311
        %v1159 = vadd.f32 %v1142, %v311
        %v1160 = vadd.f32 %v1146, %v316
        %v1161 = vadd.f32 %v1148, %v316
        %v1162 = vadd.f32 %v1152, %v321
        %v1163 = vadd.f32 %v1154, %v321
        %v1164 = vtanh.pop %v1156
        %v1165 = vtanh.pop %v1157
        %v1166 = vtanh.pop %v1158
        %v1167 = vtanh.pop %v1159
        %v1168 = vtanh.pop %v1160
        %v1169 = vtanh.pop %v1161
        %v1170 = vtanh.pop %v1162
        %v1171 = vtanh.pop %v1163
        %v1172 = vld [vmem:[%s5] sm:$0xff]
        %v1174 = vsel %vm339, %v1172, 0
        %1176 = vmatprep.subr.mxu0 0.0
        %1177 = vmatpush1.msra.mxu0 0.0
        %1178 = vmatprep.subr.mxu0 0.0
        %1179 = vmatpush1.msra.mxu0 0.0
        %1180 = vmatprep.subr.mxu0 0.0
        %1181 = vmatpush1.msra.mxu0 0.0
        %1182 = vmatprep.subr.mxu0 0.0
        %1183 = vmatpush1.msra.mxu0 0.0
        %1184 = vmatprep.subr.mxu0 0.0
        %1185 = vmatpush1.msra.mxu0 0.0
        %1186 = vmatprep.subr.mxu0 0.0
        %1187 = vmatpush1.msra.mxu0 0.0
        %1188 = vmatprep.subr.mxu0 0.0
        %1189 = vmatpush1.msra.mxu0 0.0
        %1190 = vmatprep.subr.mxu0 0.0
        %1191 = vmatpush1.msra.mxu0 0.0
        %1192 = vmatprep.subr.mxu0 0.0
        %1193 = vmatpush1.msra.mxu0 0.0
        %1194 = vmatprep.subr.mxu0 0.0
        %1195 = vmatpush1.msra.mxu0 0.0
        %1196 = vmatprep.subr.mxu0 0.0
        %1197 = vmatpush1.msra.mxu0 0.0
        %1198 = vmatprep.subr.mxu0 0.0
        %1199 = vmatpush1.msra.mxu0 0.0
        %1200 = vmatprep.subr.mxu0 %v1171
        %1201 = vmatpush1.msra.mxu0 %v1170
        %1202 = vmatprep.subr.mxu0 %v1169
        %1203 = vmatpush1.msra.mxu0 %v1168
        %1204 = vmatprep.subr.mxu0 %v1167
        %1205 = vmatpush1.msra.mxu0 %v1166
        %1206 = vmatprep.subr.mxu0 %v1165
        %1207 = vmatpush1.msra.mxu0 %v1164
        %1208 = vmatprep.subr.mxu0 0.0
        %1209 = vmatpush2.msra.mxu0 0.0
        %1210 = vmatprep.subr.mxu0 0.0
        %1211 = vmatpush2.msra.mxu0 0.0
        %1212 = vmatprep.subr.mxu0 0.0
        %1213 = vmatpush2.msra.mxu0 0.0
        %1214 = vmatprep.subr.mxu0 0.0
        %1215 = vmatpush2.msra.mxu0 0.0
        %1216 = vmatprep.subr.mxu0 0.0
        %1217 = vmatpush2.msra.mxu0 0.0
        %1218 = vmatprep.subr.mxu0 0.0
        %1219 = vmatpush2.msra.mxu0 0.0
        %1220 = vmatprep.subr.mxu0 0.0
        %1221 = vmatpush2.msra.mxu0 0.0
        %1222 = vmatprep.subr.mxu0 0.0
        %1223 = vmatpush2.msra.mxu0 0.0
        %1224 = vmatprep.subr.mxu0 0.0
        %1225 = vmatpush2.msra.mxu0 0.0
        %1226 = vmatprep.subr.mxu0 0.0
        %1227 = vmatpush2.msra.mxu0 0.0
        %1228 = vmatprep.subr.mxu0 0.0
        %1229 = vmatpush2.msra.mxu0 0.0
        %1230 = vmatprep.subr.mxu0 0.0
        %1231 = vmatpush2.msra.mxu0 0.0
        %1232 = vmatprep.subr.mxu0 0.0
        %1233 = vmatpush2.msra.mxu0 0.0
        %1234 = vmatprep.subr.mxu0 0.0
        %1235 = vmatpush2.msra.mxu0 0.0
        %1236 = vmatprep.subr.mxu0 0.0
        %1237 = vmatpush2.msra.mxu0 0.0
        %1238 = vmatprep.subr.mxu0 0.0
        %1239 = vmatpush2.msra.mxu0 0.0
        %1240 = vmatprep.mubr.f32.mxu0 0.0
        %1241 = vmatmul.mubr.f32.gmra.mxu0 %v1174
        %v1242 = vpop.f32.mrf.mxu0
        %v1243 = vadd.f32 %v327, %v1242
        %v1244 = vpop.f32.mrf.mxu0
        %v1245 = vadd.f32 %v327, %v1244
        %1246 = vdwg.mxu0
        %s1247 = scalar_lea.vmem %s298, 32 [#allocation5]
        %1248 = vst [vmem:[%s1247] sm:$0xff] %v1243
        %1249 = vst [vmem:[%s1247 + $0x8] sm:$0xff] %v1245
        %s1250 = scalar_lea.vmem %s273, 48 [#allocation4]
        %v1251 = vld [vmem:[%s1250] sm:$0xff]
        %v1252 = vld [vmem:[%s1250 + $0x8] sm:$0xff]
        %v1253 = vld [vmem:[%s2] sm:$0xff]
        %v1254 = vld [vmem:[%s2 + $0x8] sm:$0xff]
        %v1255 = vld [vmem:[%s2 + $0x10] sm:$0xff]
        %v1256 = vld [vmem:[%s2 + $0x18] sm:$0xff]
        %v1257 = vld [vmem:[%s3] sm:$0xff]
        %v1258 = vld [vmem:[%s3 + $0x8] sm:$0xff]
        %v1259 = vld [vmem:[%s3 + $0x10] sm:$0xff]
        %v1260 = vld [vmem:[%s3 + $0x18] sm:$0xff]
        %v1262 = vsel %vm339, %v1257, 0
        %v1265 = vsel %vm339, %v1258, 0
        %v1268 = vsel %vm339, %v1259, 0
        %v1271 = vsel %vm339, %v1260, 0
        %1273 = vmatprep.subr.mxu0 0.0
        %1274 = vmatpush1.msra.mxu0 0.0
        %1275 = vmatprep.subr.mxu0 0.0
        %1276 = vmatpush1.msra.mxu0 0.0
        %1277 = vmatprep.subr.mxu0 0.0
        %1278 = vmatpush1.msra.mxu0 0.0
        %1279 = vmatprep.subr.mxu0 0.0
        %1280 = vmatpush1.msra.mxu0 0.0
        %1281 = vmatprep.subr.mxu0 0.0
        %1282 = vmatpush1.msra.mxu0 0.0
        %1283 = vmatprep.subr.mxu0 0.0
        %1284 = vmatpush1.msra.mxu0 0.0
        %1285 = vmatprep.subr.mxu0 0.0
        %1286 = vmatpush1.msra.mxu0 0.0
        %1287 = vmatprep.subr.mxu0 0.0
        %1288 = vmatpush1.msra.mxu0 0.0
        %1289 = vmatprep.subr.mxu0 0.0
        %1290 = vmatpush1.msra.mxu0 0.0
        %1291 = vmatprep.subr.mxu0 0.0
        %1292 = vmatpush1.msra.mxu0 0.0
        %1293 = vmatprep.subr.mxu0 0.0
        %1294 = vmatpush1.msra.mxu0 0.0
        %1295 = vmatprep.subr.mxu0 0.0
        %1296 = vmatpush1.msra.mxu0 0.0
        %1297 = vmatprep.subr.mxu0 %v1171
        %1298 = vmatpush1.msra.mxu0 %v1170
        %1299 = vmatprep.subr.mxu0 %v1169
        %1300 = vmatpush1.msra.mxu0 %v1168
        %1301 = vmatprep.subr.mxu0 %v1167
        %1302 = vmatpush1.msra.mxu0 %v1166
        %1303 = vmatprep.subr.mxu0 %v1165
        %1304 = vmatpush1.msra.mxu0 %v1164
        %1305 = vmatprep.subr.mxu0 0.0
        %1306 = vmatpush2.msra.mxu0 0.0
        %1307 = vmatprep.subr.mxu0 0.0
        %1308 = vmatpush2.msra.mxu0 0.0
        %1309 = vmatprep.subr.mxu0 0.0
        %1310 = vmatpush2.msra.mxu0 0.0
        %1311 = vmatprep.subr.mxu0 0.0
        %1312 = vmatpush2.msra.mxu0 0.0
        %1313 = vmatprep.subr.mxu0 0.0
        %1314 = vmatpush2.msra.mxu0 0.0
        %1315 = vmatprep.subr.mxu0 0.0
        %1316 = vmatpush2.msra.mxu0 0.0
        %1317 = vmatprep.subr.mxu0 0.0
        %1318 = vmatpush2.msra.mxu0 0.0
        %1319 = vmatprep.subr.mxu0 0.0
        %1320 = vmatpush2.msra.mxu0 0.0
        %1321 = vmatprep.subr.mxu0 0.0
        %1322 = vmatpush2.msra.mxu0 0.0
        %1323 = vmatprep.subr.mxu0 0.0
        %1324 = vmatpush2.msra.mxu0 0.0
        %1325 = vmatprep.subr.mxu0 0.0
        %1326 = vmatpush2.msra.mxu0 0.0
        %1327 = vmatprep.subr.mxu0 0.0
        %1328 = vmatpush2.msra.mxu0 0.0
        %1329 = vmatprep.subr.mxu0 0.0
        %1330 = vmatpush2.msra.mxu0 0.0
        %1331 = vmatprep.subr.mxu0 0.0
        %1332 = vmatpush2.msra.mxu0 0.0
        %1333 = vmatprep.subr.mxu0 0.0
        %1334 = vmatpush2.msra.mxu0 0.0
        %1335 = vmatprep.subr.mxu0 0.0
        %1336 = vmatpush2.msra.mxu0 0.0
        %1337 = vmatprep.mubr.f32.mxu0 0.0
        %1338 = vmatmul.mubr.f32.gmra.mxu0 %v1262
        %v1339 = vpop.f32.mrf.mxu0
        %v1340 = vadd.f32 0.0, %v1339
        %v1341 = vpop.f32.mrf.mxu0
        %v1342 = vadd.f32 0.0, %v1341
        %1343 = vmatprep.mubr.f32.mxu0 0.0
        %1344 = vmatmul.mubr.f32.gmra.mxu0 %v1265
        %v1345 = vpop.f32.mrf.mxu0
        %v1346 = vadd.f32 0.0, %v1345
        %v1347 = vpop.f32.mrf.mxu0
        %v1348 = vadd.f32 0.0, %v1347
        %1349 = vmatprep.mubr.f32.mxu0 0.0
        %1350 = vmatmul.mubr.f32.gmra.mxu0 %v1268
        %v1351 = vpop.f32.mrf.mxu0
        %v1352 = vadd.f32 0.0, %v1351
        %v1353 = vpop.f32.mrf.mxu0
        %v1354 = vadd.f32 0.0, %v1353
        %1355 = vmatprep.mubr.f32.mxu0 0.0
        %1356 = vmatmul.mubr.f32.gmra.mxu0 %v1271
        %v1357 = vpop.f32.mrf.mxu0
        %v1358 = vadd.f32 0.0, %v1357
        %v1359 = vpop.f32.mrf.mxu0
        %v1360 = vadd.f32 0.0, %v1359
        %1361 = vdwg.mxu0
        %v1363 = vsel %vm441, %v1253, 0
        %v1366 = vsel %vm441, %v1254, 0
        %v1369 = vsel %vm441, %v1255, 0
        %v1372 = vsel %vm441, %v1256, 0
        %1374 = vmatprep.subr.mxu0 0.0
        %1375 = vmatpush1.msra.mxu0 0.0
        %1376 = vmatprep.subr.mxu0 0.0
        %1377 = vmatpush1.msra.mxu0 0.0
        %1378 = vmatprep.subr.mxu0 0.0
        %1379 = vmatpush1.msra.mxu0 0.0
        %1380 = vmatprep.subr.mxu0 0.0
        %1381 = vmatpush1.msra.mxu0 0.0
        %1382 = vmatprep.subr.mxu0 0.0
        %1383 = vmatpush1.msra.mxu0 0.0
        %1384 = vmatprep.subr.mxu0 0.0
        %1385 = vmatpush1.msra.mxu0 0.0
        %1386 = vmatprep.subr.mxu0 0.0
        %1387 = vmatpush1.msra.mxu0 0.0
        %1388 = vmatprep.subr.mxu0 0.0
        %1389 = vmatpush1.msra.mxu0 0.0
        %1390 = vmatprep.subr.mxu0 0.0
        %1391 = vmatpush1.msra.mxu0 0.0
        %1392 = vmatprep.subr.mxu0 0.0
        %1393 = vmatpush1.msra.mxu0 0.0
        %1394 = vmatprep.subr.mxu0 0.0
        %1395 = vmatpush1.msra.mxu0 0.0
        %1396 = vmatprep.subr.mxu0 0.0
        %1397 = vmatpush1.msra.mxu0 0.0
        %1398 = vmatprep.subr.mxu0 0.0
        %1399 = vmatpush1.msra.mxu0 0.0
        %1400 = vmatprep.subr.mxu0 0.0
        %1401 = vmatpush1.msra.mxu0 0.0
        %1402 = vmatprep.subr.mxu0 0.0
        %1403 = vmatpush1.msra.mxu0 0.0
        %1404 = vmatprep.subr.mxu0 %v1252
        %1405 = vmatpush1.msra.mxu0 %v1251
        %1406 = vmatprep.subr.mxu0 0.0
        %1407 = vmatpush2.msra.mxu0 0.0
        %1408 = vmatprep.subr.mxu0 0.0
        %1409 = vmatpush2.msra.mxu0 0.0
        %1410 = vmatprep.subr.mxu0 0.0
        %1411 = vmatpush2.msra.mxu0 0.0
        %1412 = vmatprep.subr.mxu0 0.0
        %1413 = vmatpush2.msra.mxu0 0.0
        %1414 = vmatprep.subr.mxu0 0.0
        %1415 = vmatpush2.msra.mxu0 0.0
        %1416 = vmatprep.subr.mxu0 0.0
        %1417 = vmatpush2.msra.mxu0 0.0
        %1418 = vmatprep.subr.mxu0 0.0
        %1419 = vmatpush2.msra.mxu0 0.0
        %1420 = vmatprep.subr.mxu0 0.0
        %1421 = vmatpush2.msra.mxu0 0.0
        %1422 = vmatprep.subr.mxu0 0.0
        %1423 = vmatpush2.msra.mxu0 0.0
        %1424 = vmatprep.subr.mxu0 0.0
        %1425 = vmatpush2.msra.mxu0 0.0
        %1426 = vmatprep.subr.mxu0 0.0
        %1427 = vmatpush2.msra.mxu0 0.0
        %1428 = vmatprep.subr.mxu0 0.0
        %1429 = vmatpush2.msra.mxu0 0.0
        %1430 = vmatprep.subr.mxu0 0.0
        %1431 = vmatpush2.msra.mxu0 0.0
        %1432 = vmatprep.subr.mxu0 0.0
        %1433 = vmatpush2.msra.mxu0 0.0
        %1434 = vmatprep.subr.mxu0 0.0
        %1435 = vmatpush2.msra.mxu0 0.0
        %1436 = vmatprep.subr.mxu0 0.0
        %1437 = vmatpush2.msra.mxu0 0.0
        %1438 = vmatprep.mubr.f32.mxu0 0.0
        %1439 = vmatmul.mubr.f32.gmra.mxu0 %v1363
        %v1440 = vpop.f32.mrf.mxu0
        %v1441 = vadd.f32 %v1340, %v1440
        %v1442 = vpop.f32.mrf.mxu0
        %v1443 = vadd.f32 %v1342, %v1442
        %1444 = vmatprep.mubr.f32.mxu0 0.0
        %1445 = vmatmul.mubr.f32.gmra.mxu0 %v1366
        %v1446 = vpop.f32.mrf.mxu0
        %v1447 = vadd.f32 %v1346, %v1446
        %v1448 = vpop.f32.mrf.mxu0
        %v1449 = vadd.f32 %v1348, %v1448
        %1450 = vmatprep.mubr.f32.mxu0 0.0
        %1451 = vmatmul.mubr.f32.gmra.mxu0 %v1369
        %v1452 = vpop.f32.mrf.mxu0
        %v1453 = vadd.f32 %v1352, %v1452
        %v1454 = vpop.f32.mrf.mxu0
        %v1455 = vadd.f32 %v1354, %v1454
        %1456 = vmatprep.mubr.f32.mxu0 0.0
        %1457 = vmatmul.mubr.f32.gmra.mxu0 %v1372
        %v1458 = vpop.f32.mrf.mxu0
        %v1459 = vadd.f32 %v1358, %v1458
        %v1460 = vpop.f32.mrf.mxu0
        %v1461 = vadd.f32 %v1360, %v1460
        %1462 = vdwg.mxu0
        %v1463 = vadd.f32 %v1441, %v306
        %v1464 = vadd.f32 %v1443, %v306
        %v1465 = vadd.f32 %v1447, %v311
        %v1466 = vadd.f32 %v1449, %v311
        %v1467 = vadd.f32 %v1453, %v316
        %v1468 = vadd.f32 %v1455, %v316
        %v1469 = vadd.f32 %v1459, %v321
        %v1470 = vadd.f32 %v1461, %v321
        %v1471 = vtanh.pop %v1463
        %v1472 = vtanh.pop %v1464
        %v1473 = vtanh.pop %v1465
        %v1474 = vtanh.pop %v1466
        %v1475 = vtanh.pop %v1467
        %v1476 = vtanh.pop %v1468
        %v1477 = vtanh.pop %v1469
        %v1478 = vtanh.pop %v1470
        %v1479 = vld [vmem:[%s5] sm:$0xff]
        %v1481 = vsel %vm339, %v1479, 0
        %1483 = vmatprep.subr.mxu0 0.0
        %1484 = vmatpush1.msra.mxu0 0.0
        %1485 = vmatprep.subr.mxu0 0.0
        %1486 = vmatpush1.msra.mxu0 0.0
        %1487 = vmatprep.subr.mxu0 0.0
        %1488 = vmatpush1.msra.mxu0 0.0
        %1489 = vmatprep.subr.mxu0 0.0
        %1490 = vmatpush1.msra.mxu0 0.0
        %1491 = vmatprep.subr.mxu0 0.0
        %1492 = vmatpush1.msra.mxu0 0.0
        %1493 = vmatprep.subr.mxu0 0.0
        %1494 = vmatpush1.msra.mxu0 0.0
        %1495 = vmatprep.subr.mxu0 0.0
        %1496 = vmatpush1.msra.mxu0 0.0
        %1497 = vmatprep.subr.mxu0 0.0
        %1498 = vmatpush1.msra.mxu0 0.0
        %1499 = vmatprep.subr.mxu0 0.0
        %1500 = vmatpush1.msra.mxu0 0.0
        %1501 = vmatprep.subr.mxu0 0.0
        %1502 = vmatpush1.msra.mxu0 0.0
        %1503 = vmatprep.subr.mxu0 0.0
        %1504 = vmatpush1.msra.mxu0 0.0
        %1505 = vmatprep.subr.mxu0 0.0
        %1506 = vmatpush1.msra.mxu0 0.0
        %1507 = vmatprep.subr.mxu0 %v1478
        %1508 = vmatpush1.msra.mxu0 %v1477
        %1509 = vmatprep.subr.mxu0 %v1476
        %1510 = vmatpush1.msra.mxu0 %v1475
        %1511 = vmatprep.subr.mxu0 %v1474
        %1512 = vmatpush1.msra.mxu0 %v1473
        %1513 = vmatprep.subr.mxu0 %v1472
        %1514 = vmatpush1.msra.mxu0 %v1471
        %1515 = vmatprep.subr.mxu0 0.0
        %1516 = vmatpush2.msra.mxu0 0.0
        %1517 = vmatprep.subr.mxu0 0.0
        %1518 = vmatpush2.msra.mxu0 0.0
        %1519 = vmatprep.subr.mxu0 0.0
        %1520 = vmatpush2.msra.mxu0 0.0
        %1521 = vmatprep.subr.mxu0 0.0
        %1522 = vmatpush2.msra.mxu0 0.0
        %1523 = vmatprep.subr.mxu0 0.0
        %1524 = vmatpush2.msra.mxu0 0.0
        %1525 = vmatprep.subr.mxu0 0.0
        %1526 = vmatpush2.msra.mxu0 0.0
        %1527 = vmatprep.subr.mxu0 0.0
        %1528 = vmatpush2.msra.mxu0 0.0
        %1529 = vmatprep.subr.mxu0 0.0
        %1530 = vmatpush2.msra.mxu0 0.0
        %1531 = vmatprep.subr.mxu0 0.0
        %1532 = vmatpush2.msra.mxu0 0.0
        %1533 = vmatprep.subr.mxu0 0.0
        %1534 = vmatpush2.msra.mxu0 0.0
        %1535 = vmatprep.subr.mxu0 0.0
        %1536 = vmatpush2.msra.mxu0 0.0
        %1537 = vmatprep.subr.mxu0 0.0
        %1538 = vmatpush2.msra.mxu0 0.0
        %1539 = vmatprep.subr.mxu0 0.0
        %1540 = vmatpush2.msra.mxu0 0.0
        %1541 = vmatprep.subr.mxu0 0.0
        %1542 = vmatpush2.msra.mxu0 0.0
        %1543 = vmatprep.subr.mxu0 0.0
        %1544 = vmatpush2.msra.mxu0 0.0
        %1545 = vmatprep.subr.mxu0 0.0
        %1546 = vmatpush2.msra.mxu0 0.0
        %1547 = vmatprep.mubr.f32.mxu0 0.0
        %1548 = vmatmul.mubr.f32.gmra.mxu0 %v1481
        %v1549 = vpop.f32.mrf.mxu0
        %v1550 = vadd.f32 %v327, %v1549
        %v1551 = vpop.f32.mrf.mxu0
        %v1552 = vadd.f32 %v327, %v1551
        %1553 = vdwg.mxu0
        %s1554 = scalar_lea.vmem %s298, 48 [#allocation5]
        %1555 = vst [vmem:[%s1554] sm:$0xff] %v1550
        %1556 = vst [vmem:[%s1554 + $0x8] sm:$0xff] %v1552
        %s1557 = scalar_lea.vmem %s273, 64 [#allocation4]
        %v1558 = vld [vmem:[%s1557] sm:$0xff]
        %v1559 = vld [vmem:[%s1557 + $0x8] sm:$0xff]
        %s1560 = sld [smem:[#allocation3 + %s24]]
        %s1561 = scvt.s32.f32 %s1560
        %v1562 = vstv %s1561
        %v1563 = vmul.f32 %v1562, %v1558
        %v1564 = vmul.f32 %v1562, %v1559
        %s1565 = ssub.f32 1.0, %s1561
        %v1566 = vstv %s1565
        %v1567 = vmul.f32 %v1566, %v1550
        %v1568 = vmul.f32 %v1566, %v1552
        %v1569 = vadd.f32 %v1563, %v1567
        %v1570 = vadd.f32 %v1564, %v1568
        %v1571 = vld [vmem:[%s2] sm:$0xff]
        %v1572 = vld [vmem:[%s2 + $0x8] sm:$0xff]
        %v1573 = vld [vmem:[%s2 + $0x10] sm:$0xff]
        %v1574 = vld [vmem:[%s2 + $0x18] sm:$0xff]
        %v1575 = vld [vmem:[%s3] sm:$0xff]
        %v1576 = vld [vmem:[%s3 + $0x8] sm:$0xff]
        %v1577 = vld [vmem:[%s3 + $0x10] sm:$0xff]
        %v1578 = vld [vmem:[%s3 + $0x18] sm:$0xff]
        %v1580 = vsel %vm339, %v1575, 0
        %v1583 = vsel %vm339, %v1576, 0
        %v1586 = vsel %vm339, %v1577, 0
        %v1589 = vsel %vm339, %v1578, 0
        %1591 = vmatprep.subr.mxu0 0.0
        %1592 = vmatpush1.msra.mxu0 0.0
        %1593 = vmatprep.subr.mxu0 0.0
        %1594 = vmatpush1.msra.mxu0 0.0
        %1595 = vmatprep.subr.mxu0 0.0
        %1596 = vmatpush1.msra.mxu0 0.0
        %1597 = vmatprep.subr.mxu0 0.0
        %1598 = vmatpush1.msra.mxu0 0.0
        %1599 = vmatprep.subr.mxu0 0.0
        %1600 = vmatpush1.msra.mxu0 0.0
        %1601 = vmatprep.subr.mxu0 0.0
        %1602 = vmatpush1.msra.mxu0 0.0
        %1603 = vmatprep.subr.mxu0 0.0
        %1604 = vmatpush1.msra.mxu0 0.0
        %1605 = vmatprep.subr.mxu0 0.0
        %1606 = vmatpush1.msra.mxu0 0.0
        %1607 = vmatprep.subr.mxu0 0.0
        %1608 = vmatpush1.msra.mxu0 0.0
        %1609 = vmatprep.subr.mxu0 0.0
        %1610 = vmatpush1.msra.mxu0 0.0
        %1611 = vmatprep.subr.mxu0 0.0
        %1612 = vmatpush1.msra.mxu0 0.0
        %1613 = vmatprep.subr.mxu0 0.0
        %1614 = vmatpush1.msra.mxu0 0.0
        %1615 = vmatprep.subr.mxu0 %v1478
        %1616 = vmatpush1.msra.mxu0 %v1477
        %1617 = vmatprep.subr.mxu0 %v1476
        %1618 = vmatpush1.msra.mxu0 %v1475
        %1619 = vmatprep.subr.mxu0 %v1474
        %1620 = vmatpush1.msra.mxu0 %v1473
        %1621 = vmatprep.subr.mxu0 %v1472
        %1622 = vmatpush1.msra.mxu0 %v1471
        %1623 = vmatprep.subr.mxu0 0.0
        %1624 = vmatpush2.msra.mxu0 0.0
        %1625 = vmatprep.subr.mxu0 0.0
        %1626 = vmatpush2.msra.mxu0 0.0
        %1627 = vmatprep.subr.mxu0 0.0
        %1628 = vmatpush2.msra.mxu0 0.0
        %1629 = vmatprep.subr.mxu0 0.0
        %1630 = vmatpush2.msra.mxu0 0.0
        %1631 = vmatprep.subr.mxu0 0.0
        %1632 = vmatpush2.msra.mxu0 0.0
        %1633 = vmatprep.subr.mxu0 0.0
        %1634 = vmatpush2.msra.mxu0 0.0
        %1635 = vmatprep.subr.mxu0 0.0
        %1636 = vmatpush2.msra.mxu0 0.0
        %1637 = vmatprep.subr.mxu0 0.0
        %1638 = vmatpush2.msra.mxu0 0.0
        %1639 = vmatprep.subr.mxu0 0.0
        %1640 = vmatpush2.msra.mxu0 0.0
        %1641 = vmatprep.subr.mxu0 0.0
        %1642 = vmatpush2.msra.mxu0 0.0
        %1643 = vmatprep.subr.mxu0 0.0
        %1644 = vmatpush2.msra.mxu0 0.0
        %1645 = vmatprep.subr.mxu0 0.0
        %1646 = vmatpush2.msra.mxu0 0.0
        %1647 = vmatprep.subr.mxu0 0.0
        %1648 = vmatpush2.msra.mxu0 0.0
        %1649 = vmatprep.subr.mxu0 0.0
        %1650 = vmatpush2.msra.mxu0 0.0
        %1651 = vmatprep.subr.mxu0 0.0
        %1652 = vmatpush2.msra.mxu0 0.0
        %1653 = vmatprep.subr.mxu0 0.0
        %1654 = vmatpush2.msra.mxu0 0.0
        %1655 = vmatprep.mubr.f32.mxu0 0.0
        %1656 = vmatmul.mubr.f32.gmra.mxu0 %v1580
        %v1657 = vpop.f32.mrf.mxu0
        %v1658 = vadd.f32 0.0, %v1657
        %v1659 = vpop.f32.mrf.mxu0
        %v1660 = vadd.f32 0.0, %v1659
        %1661 = vmatprep.mubr.f32.mxu0 0.0
        %1662 = vmatmul.mubr.f32.gmra.mxu0 %v1583
        %v1663 = vpop.f32.mrf.mxu0
        %v1664 = vadd.f32 0.0, %v1663
        %v1665 = vpop.f32.mrf.mxu0
        %v1666 = vadd.f32 0.0, %v1665
        %1667 = vmatprep.mubr.f32.mxu0 0.0
        %1668 = vmatmul.mubr.f32.gmra.mxu0 %v1586
        %v1669 = vpop.f32.mrf.mxu0
        %v1670 = vadd.f32 0.0, %v1669
        %v1671 = vpop.f32.mrf.mxu0
        %v1672 = vadd.f32 0.0, %v1671
        %1673 = vmatprep.mubr.f32.mxu0 0.0
        %1674 = vmatmul.mubr.f32.gmra.mxu0 %v1589
        %v1675 = vpop.f32.mrf.mxu0
        %v1676 = vadd.f32 0.0, %v1675
        %v1677 = vpop.f32.mrf.mxu0
        %v1678 = vadd.f32 0.0, %v1677
        %1679 = vdwg.mxu0
        %v1681 = vsel %vm441, %v1571, 0
        %v1684 = vsel %vm441, %v1572, 0
        %v1687 = vsel %vm441, %v1573, 0
        %v1690 = vsel %vm441, %v1574, 0
        %1692 = vmatprep.subr.mxu0 0.0
        %1693 = vmatpush1.msra.mxu0 0.0
        %1694 = vmatprep.subr.mxu0 0.0
        %1695 = vmatpush1.msra.mxu0 0.0
        %1696 = vmatprep.subr.mxu0 0.0
        %1697 = vmatpush1.msra.mxu0 0.0
        %1698 = vmatprep.subr.mxu0 0.0
        %1699 = vmatpush1.msra.mxu0 0.0
        %1700 = vmatprep.subr.mxu0 0.0
        %1701 = vmatpush1.msra.mxu0 0.0
        %1702 = vmatprep.subr.mxu0 0.0
        %1703 = vmatpush1.msra.mxu0 0.0
        %1704 = vmatprep.subr.mxu0 0.0
        %1705 = vmatpush1.msra.mxu0 0.0
        %1706 = vmatprep.subr.mxu0 0.0
        %1707 = vmatpush1.msra.mxu0 0.0
        %1708 = vmatprep.subr.mxu0 0.0
        %1709 = vmatpush1.msra.mxu0 0.0
        %1710 = vmatprep.subr.mxu0 0.0
        %1711 = vmatpush1.msra.mxu0 0.0
        %1712 = vmatprep.subr.mxu0 0.0
        %1713 = vmatpush1.msra.mxu0 0.0
        %1714 = vmatprep.subr.mxu0 0.0
        %1715 = vmatpush1.msra.mxu0 0.0
        %1716 = vmatprep.subr.mxu0 0.0
        %1717 = vmatpush1.msra.mxu0 0.0
        %1718 = vmatprep.subr.mxu0 0.0
        %1719 = vmatpush1.msra.mxu0 0.0
        %1720 = vmatprep.subr.mxu0 0.0
        %1721 = vmatpush1.msra.mxu0 0.0
        %1722 = vmatprep.subr.mxu0 %v1570
        %1723 = vmatpush1.msra.mxu0 %v1569
        %1724 = vmatprep.subr.mxu0 0.0
        %1725 = vmatpush2.msra.mxu0 0.0
        %1726 = vmatprep.subr.mxu0 0.0
        %1727 = vmatpush2.msra.mxu0 0.0
        %1728 = vmatprep.subr.mxu0 0.0
        %1729 = vmatpush2.msra.mxu0 0.0
        %1730 = vmatprep.subr.mxu0 0.0
        %1731 = vmatpush2.msra.mxu0 0.0
        %1732 = vmatprep.subr.mxu0 0.0
        %1733 = vmatpush2.msra.mxu0 0.0
        %1734 = vmatprep.subr.mxu0 0.0
        %1735 = vmatpush2.msra.mxu0 0.0
        %1736 = vmatprep.subr.mxu0 0.0
        %1737 = vmatpush2.msra.mxu0 0.0
        %1738 = vmatprep.subr.mxu0 0.0
        %1739 = vmatpush2.msra.mxu0 0.0
        %1740 = vmatprep.subr.mxu0 0.0
        %1741 = vmatpush2.msra.mxu0 0.0
        %1742 = vmatprep.subr.mxu0 0.0
        %1743 = vmatpush2.msra.mxu0 0.0
        %1744 = vmatprep.subr.mxu0 0.0
        %1745 = vmatpush2.msra.mxu0 0.0
        %1746 = vmatprep.subr.mxu0 0.0
        %1747 = vmatpush2.msra.mxu0 0.0
        %1748 = vmatprep.subr.mxu0 0.0
        %1749 = vmatpush2.msra.mxu0 0.0
        %1750 = vmatprep.subr.mxu0 0.0
        %1751 = vmatpush2.msra.mxu0 0.0
        %1752 = vmatprep.subr.mxu0 0.0
        %1753 = vmatpush2.msra.mxu0 0.0
        %1754 = vmatprep.subr.mxu0 0.0
        %1755 = vmatpush2.msra.mxu0 0.0
        %1756 = vmatprep.mubr.f32.mxu0 0.0
        %1757 = vmatmul.mubr.f32.gmra.mxu0 %v1681
        %v1758 = vpop.f32.mrf.mxu0
        %v1759 = vadd.f32 %v1658, %v1758
        %v1760 = vpop.f32.mrf.mxu0
        %v1761 = vadd.f32 %v1660, %v1760
        %1762 = vmatprep.mubr.f32.mxu0 0.0
        %1763 = vmatmul.mubr.f32.gmra.mxu0 %v1684
        %v1764 = vpop.f32.mrf.mxu0
        %v1765 = vadd.f32 %v1664, %v1764
        %v1766 = vpop.f32.mrf.mxu0
        %v1767 = vadd.f32 %v1666, %v1766
        %1768 = vmatprep.mubr.f32.mxu0 0.0
        %1769 = vmatmul.mubr.f32.gmra.mxu0 %v1687
        %v1770 = vpop.f32.mrf.mxu0
        %v1771 = vadd.f32 %v1670, %v1770
        %v1772 = vpop.f32.mrf.mxu0
        %v1773 = vadd.f32 %v1672, %v1772
        %1774 = vmatprep.mubr.f32.mxu0 0.0
        %1775 = vmatmul.mubr.f32.gmra.mxu0 %v1690
        %v1776 = vpop.f32.mrf.mxu0
        %v1777 = vadd.f32 %v1676, %v1776
        %v1778 = vpop.f32.mrf.mxu0
        %v1779 = vadd.f32 %v1678, %v1778
        %1780 = vdwg.mxu0
        %v1781 = vadd.f32 %v1759, %v306
        %v1782 = vadd.f32 %v1761, %v306
        %v1783 = vadd.f32 %v1765, %v311
        %v1784 = vadd.f32 %v1767, %v311
        %v1785 = vadd.f32 %v1771, %v316
        %v1786 = vadd.f32 %v1773, %v316
        %v1787 = vadd.f32 %v1777, %v321
        %v1788 = vadd.f32 %v1779, %v321
        %v1789 = vtanh.pop %v1781
        %v1790 = vtanh.pop %v1782
        %v1791 = vtanh.pop %v1783
        %v1792 = vtanh.pop %v1784
        %v1793 = vtanh.pop %v1785
        %v1794 = vtanh.pop %v1786
        %v1795 = vtanh.pop %v1787
        %v1796 = vtanh.pop %v1788
        %v1797 = vld [vmem:[%s5] sm:$0xff]
        %v1799 = vsel %vm339, %v1797, 0
        %1801 = vmatprep.subr.mxu0 0.0
        %1802 = vmatpush1.msra.mxu0 0.0
        %1803 = vmatprep.subr.mxu0 0.0
        %1804 = vmatpush1.msra.mxu0 0.0
        %1805 = vmatprep.subr.mxu0 0.0
        %1806 = vmatpush1.msra.mxu0 0.0
        %1807 = vmatprep.subr.mxu0 0.0
        %1808 = vmatpush1.msra.mxu0 0.0
        %1809 = vmatprep.subr.mxu0 0.0
        %1810 = vmatpush1.msra.mxu0 0.0
        %1811 = vmatprep.subr.mxu0 0.0
        %1812 = vmatpush1.msra.mxu0 0.0
        %1813 = vmatprep.subr.mxu0 0.0
        %1814 = vmatpush1.msra.mxu0 0.0
        %1815 = vmatprep.subr.mxu0 0.0
        %1816 = vmatpush1.msra.mxu0 0.0
        %1817 = vmatprep.subr.mxu0 0.0
        %1818 = vmatpush1.msra.mxu0 0.0
        %1819 = vmatprep.subr.mxu0 0.0
        %1820 = vmatpush1.msra.mxu0 0.0
        %1821 = vmatprep.subr.mxu0 0.0
        %1822 = vmatpush1.msra.mxu0 0.0
        %1823 = vmatprep.subr.mxu0 0.0
        %1824 = vmatpush1.msra.mxu0 0.0
        %1825 = vmatprep.subr.mxu0 %v1796
        %1826 = vmatpush1.msra.mxu0 %v1795
        %1827 = vmatprep.subr.mxu0 %v1794
        %1828 = vmatpush1.msra.mxu0 %v1793
        %1829 = vmatprep.subr.mxu0 %v1792
        %1830 = vmatpush1.msra.mxu0 %v1791
        %1831 = vmatprep.subr.mxu0 %v1790
        %1832 = vmatpush1.msra.mxu0 %v1789
        %1833 = vmatprep.subr.mxu0 0.0
        %1834 = vmatpush2.msra.mxu0 0.0
        %1835 = vmatprep.subr.mxu0 0.0
        %1836 = vmatpush2.msra.mxu0 0.0
        %1837 = vmatprep.subr.mxu0 0.0
        %1838 = vmatpush2.msra.mxu0 0.0
        %1839 = vmatprep.subr.mxu0 0.0
        %1840 = vmatpush2.msra.mxu0 0.0
        %1841 = vmatprep.subr.mxu0 0.0
        %1842 = vmatpush2.msra.mxu0 0.0
        %1843 = vmatprep.subr.mxu0 0.0
        %1844 = vmatpush2.msra.mxu0 0.0
        %1845 = vmatprep.subr.mxu0 0.0
        %1846 = vmatpush2.msra.mxu0 0.0
        %1847 = vmatprep.subr.mxu0 0.0
        %1848 = vmatpush2.msra.mxu0 0.0
        %1849 = vmatprep.subr.mxu0 0.0
        %1850 = vmatpush2.msra.mxu0 0.0
        %1851 = vmatprep.subr.mxu0 0.0
        %1852 = vmatpush2.msra.mxu0 0.0
        %1853 = vmatprep.subr.mxu0 0.0
        %1854 = vmatpush2.msra.mxu0 0.0
        %1855 = vmatprep.subr.mxu0 0.0
        %1856 = vmatpush2.msra.mxu0 0.0
        %1857 = vmatprep.subr.mxu0 0.0
        %1858 = vmatpush2.msra.mxu0 0.0
        %1859 = vmatprep.subr.mxu0 0.0
        %1860 = vmatpush2.msra.mxu0 0.0
        %1861 = vmatprep.subr.mxu0 0.0
        %1862 = vmatpush2.msra.mxu0 0.0
        %1863 = vmatprep.subr.mxu0 0.0
        %1864 = vmatpush2.msra.mxu0 0.0
        %1865 = vmatprep.mubr.f32.mxu0 0.0
        %1866 = vmatmul.mubr.f32.gmra.mxu0 %v1799
        %v1867 = vpop.f32.mrf.mxu0
        %v1868 = vadd.f32 %v327, %v1867
        %v1869 = vpop.f32.mrf.mxu0
        %v1870 = vadd.f32 %v327, %v1869
        %1871 = vdwg.mxu0
        %s1872 = scalar_lea.vmem %s298, 64 [#allocation5]
        %1873 = vst [vmem:[%s1872] sm:$0xff] %v1868
        %1874 = vst [vmem:[%s1872 + $0x8] sm:$0xff] %v1870
        %s1875 = scalar_lea.vmem %s273, 80 [#allocation4]
        %v1876 = vld [vmem:[%s1875] sm:$0xff]
        %v1877 = vld [vmem:[%s1875 + $0x8] sm:$0xff]
        %s1878 = sshra.s32 %s24, 7
        %s1879 = sand.u32 %s24, 127
        %s1880 = sadd.s32 %s1878, 1
        %s1881 = smul.u32 %s1880, 128
        %s1882 = sshra.s32 %s24, 7
        %s1883 = sand.u32 %s24, 127
        %s1884 = sadd.s32 %s1881, %s1883
        %s1885 = sld [smem:[#allocation3 + %s1884]]
        %s1886 = scvt.s32.f32 %s1885
        %v1887 = vstv %s1886
        %v1888 = vmul.f32 %v1887, %v1876
        %v1889 = vmul.f32 %v1887, %v1877
        %s1890 = ssub.f32 1.0, %s1886
        %v1891 = vstv %s1890
        %v1892 = vmul.f32 %v1891, %v1868
        %v1893 = vmul.f32 %v1891, %v1870
        %v1894 = vadd.f32 %v1888, %v1892
        %v1895 = vadd.f32 %v1889, %v1893
        %v1896 = vld [vmem:[%s2] sm:$0xff]
        %v1897 = vld [vmem:[%s2 + $0x8] sm:$0xff]
        %v1898 = vld [vmem:[%s2 + $0x10] sm:$0xff]
        %v1899 = vld [vmem:[%s2 + $0x18] sm:$0xff]
        %v1900 = vld [vmem:[%s3] sm:$0xff]
        %v1901 = vld [vmem:[%s3 + $0x8] sm:$0xff]
        %v1902 = vld [vmem:[%s3 + $0x10] sm:$0xff]
        %v1903 = vld [vmem:[%s3 + $0x18] sm:$0xff]
        %v1905 = vsel %vm339, %v1900, 0
        %v1908 = vsel %vm339, %v1901, 0
        %v1911 = vsel %vm339, %v1902, 0
        %v1914 = vsel %vm339, %v1903, 0
        %1916 = vmatprep.subr.mxu0 0.0
        %1917 = vmatpush1.msra.mxu0 0.0
        %1918 = vmatprep.subr.mxu0 0.0
        %1919 = vmatpush1.msra.mxu0 0.0
        %1920 = vmatprep.subr.mxu0 0.0
        %1921 = vmatpush1.msra.mxu0 0.0
        %1922 = vmatprep.subr.mxu0 0.0
        %1923 = vmatpush1.msra.mxu0 0.0
        %1924 = vmatprep.subr.mxu0 0.0
        %1925 = vmatpush1.msra.mxu0 0.0
        %1926 = vmatprep.subr.mxu0 0.0
        %1927 = vmatpush1.msra.mxu0 0.0
        %1928 = vmatprep.subr.mxu0 0.0
        %1929 = vmatpush1.msra.mxu0 0.0
        %1930 = vmatprep.subr.mxu0 0.0
        %1931 = vmatpush1.msra.mxu0 0.0
        %1932 = vmatprep.subr.mxu0 0.0
        %1933 = vmatpush1.msra.mxu0 0.0
        %1934 = vmatprep.subr.mxu0 0.0
        %1935 = vmatpush1.msra.mxu0 0.0
        %1936 = vmatprep.subr.mxu0 0.0
        %1937 = vmatpush1.msra.mxu0 0.0
        %1938 = vmatprep.subr.mxu0 0.0
        %1939 = vmatpush1.msra.mxu0 0.0
        %1940 = vmatprep.subr.mxu0 %v1796
        %1941 = vmatpush1.msra.mxu0 %v1795
        %1942 = vmatprep.subr.mxu0 %v1794
        %1943 = vmatpush1.msra.mxu0 %v1793
        %1944 = vmatprep.subr.mxu0 %v1792
        %1945 = vmatpush1.msra.mxu0 %v1791
        %1946 = vmatprep.subr.mxu0 %v1790
        %1947 = vmatpush1.msra.mxu0 %v1789
        %1948 = vmatprep.subr.mxu0 0.0
        %1949 = vmatpush2.msra.mxu0 0.0
        %1950 = vmatprep.subr.mxu0 0.0
        %1951 = vmatpush2.msra.mxu0 0.0
        %1952 = vmatprep.subr.mxu0 0.0
        %1953 = vmatpush2.msra.mxu0 0.0
        %1954 = vmatprep.subr.mxu0 0.0
        %1955 = vmatpush2.msra.mxu0 0.0
        %1956 = vmatprep.subr.mxu0 0.0
        %1957 = vmatpush2.msra.mxu0 0.0
        %1958 = vmatprep.subr.mxu0 0.0
        %1959 = vmatpush2.msra.mxu0 0.0
        %1960 = vmatprep.subr.mxu0 0.0
        %1961 = vmatpush2.msra.mxu0 0.0
        %1962 = vmatprep.subr.mxu0 0.0
        %1963 = vmatpush2.msra.mxu0 0.0
        %1964 = vmatprep.subr.mxu0 0.0
        %1965 = vmatpush2.msra.mxu0 0.0
        %1966 = vmatprep.subr.mxu0 0.0
        %1967 = vmatpush2.msra.mxu0 0.0
        %1968 = vmatprep.subr.mxu0 0.0
        %1969 = vmatpush2.msra.mxu0 0.0
        %1970 = vmatprep.subr.mxu0 0.0
        %1971 = vmatpush2.msra.mxu0 0.0
        %1972 = vmatprep.subr.mxu0 0.0
        %1973 = vmatpush2.msra.mxu0 0.0
        %1974 = vmatprep.subr.mxu0 0.0
        %1975 = vmatpush2.msra.mxu0 0.0
        %1976 = vmatprep.subr.mxu0 0.0
        %1977 = vmatpush2.msra.mxu0 0.0
        %1978 = vmatprep.subr.mxu0 0.0
        %1979 = vmatpush2.msra.mxu0 0.0
        %1980 = vmatprep.mubr.f32.mxu0 0.0
        %1981 = vmatmul.mubr.f32.gmra.mxu0 %v1905
        %v1982 = vpop.f32.mrf.mxu0
        %v1983 = vadd.f32 0.0, %v1982
        %v1984 = vpop.f32.mrf.mxu0
        %v1985 = vadd.f32 0.0, %v1984
        %1986 = vmatprep.mubr.f32.mxu0 0.0
        %1987 = vmatmul.mubr.f32.gmra.mxu0 %v1908
        %v1988 = vpop.f32.mrf.mxu0
        %v1989 = vadd.f32 0.0, %v1988
        %v1990 = vpop.f32.mrf.mxu0
        %v1991 = vadd.f32 0.0, %v1990
        %1992 = vmatprep.mubr.f32.mxu0 0.0
        %1993 = vmatmul.mubr.f32.gmra.mxu0 %v1911
        %v1994 = vpop.f32.mrf.mxu0
        %v1995 = vadd.f32 0.0, %v1994
        %v1996 = vpop.f32.mrf.mxu0
        %v1997 = vadd.f32 0.0, %v1996
        %1998 = vmatprep.mubr.f32.mxu0 0.0
        %1999 = vmatmul.mubr.f32.gmra.mxu0 %v1914
        %v2000 = vpop.f32.mrf.mxu0
        %v2001 = vadd.f32 0.0, %v2000
        %v2002 = vpop.f32.mrf.mxu0
        %v2003 = vadd.f32 0.0, %v2002
        %2004 = vdwg.mxu0
        %v2006 = vsel %vm441, %v1896, 0
        %v2009 = vsel %vm441, %v1897, 0
        %v2012 = vsel %vm441, %v1898, 0
        %v2015 = vsel %vm441, %v1899, 0
        %2017 = vmatprep.subr.mxu0 0.0
        %2018 = vmatpush1.msra.mxu0 0.0
        %2019 = vmatprep.subr.mxu0 0.0
        %2020 = vmatpush1.msra.mxu0 0.0
        %2021 = vmatprep.subr.mxu0 0.0
        %2022 = vmatpush1.msra.mxu0 0.0
        %2023 = vmatprep.subr.mxu0 0.0
        %2024 = vmatpush1.msra.mxu0 0.0
        %2025 = vmatprep.subr.mxu0 0.0
        %2026 = vmatpush1.msra.mxu0 0.0
        %2027 = vmatprep.subr.mxu0 0.0
        %2028 = vmatpush1.msra.mxu0 0.0
        %2029 = vmatprep.subr.mxu0 0.0
        %2030 = vmatpush1.msra.mxu0 0.0
        %2031 = vmatprep.subr.mxu0 0.0
        %2032 = vmatpush1.msra.mxu0 0.0
        %2033 = vmatprep.subr.mxu0 0.0
        %2034 = vmatpush1.msra.mxu0 0.0
        %2035 = vmatprep.subr.mxu0 0.0
        %2036 = vmatpush1.msra.mxu0 0.0
        %2037 = vmatprep.subr.mxu0 0.0
        %2038 = vmatpush1.msra.mxu0 0.0
        %2039 = vmatprep.subr.mxu0 0.0
        %2040 = vmatpush1.msra.mxu0 0.0
        %2041 = vmatprep.subr.mxu0 0.0
        %2042 = vmatpush1.msra.mxu0 0.0
        %2043 = vmatprep.subr.mxu0 0.0
        %2044 = vmatpush1.msra.mxu0 0.0
        %2045 = vmatprep.subr.mxu0 0.0
        %2046 = vmatpush1.msra.mxu0 0.0
        %2047 = vmatprep.subr.mxu0 %v1895
        %2048 = vmatpush1.msra.mxu0 %v1894
        %2049 = vmatprep.subr.mxu0 0.0
        %2050 = vmatpush2.msra.mxu0 0.0
        %2051 = vmatprep.subr.mxu0 0.0
        %2052 = vmatpush2.msra.mxu0 0.0
        %2053 = vmatprep.subr.mxu0 0.0
        %2054 = vmatpush2.msra.mxu0 0.0
        %2055 = vmatprep.subr.mxu0 0.0
        %2056 = vmatpush2.msra.mxu0 0.0
        %2057 = vmatprep.subr.mxu0 0.0
        %2058 = vmatpush2.msra.mxu0 0.0
        %2059 = vmatprep.subr.mxu0 0.0
        %2060 = vmatpush2.msra.mxu0 0.0
        %2061 = vmatprep.subr.mxu0 0.0
        %2062 = vmatpush2.msra.mxu0 0.0
        %2063 = vmatprep.subr.mxu0 0.0
        %2064 = vmatpush2.msra.mxu0 0.0
        %2065 = vmatprep.subr.mxu0 0.0
        %2066 = vmatpush2.msra.mxu0 0.0
        %2067 = vmatprep.subr.mxu0 0.0
        %2068 = vmatpush2.msra.mxu0 0.0
        %2069 = vmatprep.subr.mxu0 0.0
        %2070 = vmatpush2.msra.mxu0 0.0
        %2071 = vmatprep.subr.mxu0 0.0
        %2072 = vmatpush2.msra.mxu0 0.0
        %2073 = vmatprep.subr.mxu0 0.0
        %2074 = vmatpush2.msra.mxu0 0.0
        %2075 = vmatprep.subr.mxu0 0.0
        %2076 = vmatpush2.msra.mxu0 0.0
        %2077 = vmatprep.subr.mxu0 0.0
        %2078 = vmatpush2.msra.mxu0 0.0
        %2079 = vmatprep.subr.mxu0 0.0
        %2080 = vmatpush2.msra.mxu0 0.0
        %2081 = vmatprep.mubr.f32.mxu0 0.0
        %2082 = vmatmul.mubr.f32.gmra.mxu0 %v2006
        %v2083 = vpop.f32.mrf.mxu0
        %v2084 = vadd.f32 %v1983, %v2083
        %v2085 = vpop.f32.mrf.mxu0
        %v2086 = vadd.f32 %v1985, %v2085
        %2087 = vmatprep.mubr.f32.mxu0 0.0
        %2088 = vmatmul.mubr.f32.gmra.mxu0 %v2009
        %v2089 = vpop.f32.mrf.mxu0
        %v2090 = vadd.f32 %v1989, %v2089
        %v2091 = vpop.f32.mrf.mxu0
        %v2092 = vadd.f32 %v1991, %v2091
        %2093 = vmatprep.mubr.f32.mxu0 0.0
        %2094 = vmatmul.mubr.f32.gmra.mxu0 %v2012
        %v2095 = vpop.f32.mrf.mxu0
        %v2096 = vadd.f32 %v1995, %v2095
        %v2097 = vpop.f32.mrf.mxu0
        %v2098 = vadd.f32 %v1997, %v2097
        %2099 = vmatprep.mubr.f32.mxu0 0.0
        %2100 = vmatmul.mubr.f32.gmra.mxu0 %v2015
        %v2101 = vpop.f32.mrf.mxu0
        %v2102 = vadd.f32 %v2001, %v2101
        %v2103 = vpop.f32.mrf.mxu0
        %v2104 = vadd.f32 %v2003, %v2103
        %2105 = vdwg.mxu0
        %v2106 = vadd.f32 %v2084, %v306
        %v2107 = vadd.f32 %v2086, %v306
        %v2108 = vadd.f32 %v2090, %v311
        %v2109 = vadd.f32 %v2092, %v311
        %v2110 = vadd.f32 %v2096, %v316
        %v2111 = vadd.f32 %v2098, %v316
        %v2112 = vadd.f32 %v2102, %v321
        %v2113 = vadd.f32 %v2104, %v321
        %v2114 = vtanh.pop %v2106
        %v2115 = vtanh.pop %v2107
        %v2116 = vtanh.pop %v2108
        %v2117 = vtanh.pop %v2109
        %v2118 = vtanh.pop %v2110
        %v2119 = vtanh.pop %v2111
        %v2120 = vtanh.pop %v2112
        %v2121 = vtanh.pop %v2113
        %v2122 = vld [vmem:[%s5] sm:$0xff]
        %v2124 = vsel %vm339, %v2122, 0
        %2126 = vmatprep.subr.mxu0 0.0
        %2127 = vmatpush1.msra.mxu0 0.0
        %2128 = vmatprep.subr.mxu0 0.0
        %2129 = vmatpush1.msra.mxu0 0.0
        %2130 = vmatprep.subr.mxu0 0.0
        %2131 = vmatpush1.msra.mxu0 0.0
        %2132 = vmatprep.subr.mxu0 0.0
        %2133 = vmatpush1.msra.mxu0 0.0
        %2134 = vmatprep.subr.mxu0 0.0
        %2135 = vmatpush1.msra.mxu0 0.0
        %2136 = vmatprep.subr.mxu0 0.0
        %2137 = vmatpush1.msra.mxu0 0.0
        %2138 = vmatprep.subr.mxu0 0.0
        %2139 = vmatpush1.msra.mxu0 0.0
        %2140 = vmatprep.subr.mxu0 0.0
        %2141 = vmatpush1.msra.mxu0 0.0
        %2142 = vmatprep.subr.mxu0 0.0
        %2143 = vmatpush1.msra.mxu0 0.0
        %2144 = vmatprep.subr.mxu0 0.0
        %2145 = vmatpush1.msra.mxu0 0.0
        %2146 = vmatprep.subr.mxu0 0.0
        %2147 = vmatpush1.msra.mxu0 0.0
        %2148 = vmatprep.subr.mxu0 0.0
        %2149 = vmatpush1.msra.mxu0 0.0
        %2150 = vmatprep.subr.mxu0 %v2121
        %2151 = vmatpush1.msra.mxu0 %v2120
        %2152 = vmatprep.subr.mxu0 %v2119
        %2153 = vmatpush1.msra.mxu0 %v2118
        %2154 = vmatprep.subr.mxu0 %v2117
        %2155 = vmatpush1.msra.mxu0 %v2116
        %2156 = vmatprep.subr.mxu0 %v2115
        %2157 = vmatpush1.msra.mxu0 %v2114
        %2158 = vmatprep.subr.mxu0 0.0
        %2159 = vmatpush2.msra.mxu0 0.0
        %2160 = vmatprep.subr.mxu0 0.0
        %2161 = vmatpush2.msra.mxu0 0.0
        %2162 = vmatprep.subr.mxu0 0.0
        %2163 = vmatpush2.msra.mxu0 0.0
        %2164 = vmatprep.subr.mxu0 0.0
        %2165 = vmatpush2.msra.mxu0 0.0
        %2166 = vmatprep.subr.mxu0 0.0
        %2167 = vmatpush2.msra.mxu0 0.0
        %2168 = vmatprep.subr.mxu0 0.0
        %2169 = vmatpush2.msra.mxu0 0.0
        %2170 = vmatprep.subr.mxu0 0.0
        %2171 = vmatpush2.msra.mxu0 0.0
        %2172 = vmatprep.subr.mxu0 0.0
        %2173 = vmatpush2.msra.mxu0 0.0
        %2174 = vmatprep.subr.mxu0 0.0
        %2175 = vmatpush2.msra.mxu0 0.0
        %2176 = vmatprep.subr.mxu0 0.0
        %2177 = vmatpush2.msra.mxu0 0.0
        %2178 = vmatprep.subr.mxu0 0.0
        %2179 = vmatpush2.msra.mxu0 0.0
        %2180 = vmatprep.subr.mxu0 0.0
        %2181 = vmatpush2.msra.mxu0 0.0
        %2182 = vmatprep.subr.mxu0 0.0
        %2183 = vmatpush2.msra.mxu0 0.0
        %2184 = vmatprep.subr.mxu0 0.0
        %2185 = vmatpush2.msra.mxu0 0.0
        %2186 = vmatprep.subr.mxu0 0.0
        %2187 = vmatpush2.msra.mxu0 0.0
        %2188 = vmatprep.subr.mxu0 0.0
        %2189 = vmatpush2.msra.mxu0 0.0
        %2190 = vmatprep.mubr.f32.mxu0 0.0
        %2191 = vmatmul.mubr.f32.gmra.mxu0 %v2124
        %v2192 = vpop.f32.mrf.mxu0
        %v2193 = vadd.f32 %v327, %v2192
        %v2194 = vpop.f32.mrf.mxu0
        %v2195 = vadd.f32 %v327, %v2194
        %2196 = vdwg.mxu0
        %s2197 = scalar_lea.vmem %s298, 80 [#allocation5]
        %2198 = vst [vmem:[%s2197] sm:$0xff] %v2193
        %2199 = vst [vmem:[%s2197 + $0x8] sm:$0xff] %v2195
        %s2200 = scalar_lea.vmem %s273, 96 [#allocation4]
        %v2201 = vld [vmem:[%s2200] sm:$0xff]
        %v2202 = vld [vmem:[%s2200 + $0x8] sm:$0xff]
        %s2203 = sadd.s32 %s1878, 2
        %s2204 = smul.u32 %s2203, 128
        %s2205 = sadd.s32 %s2204, %s1883
        %s2206 = sld [smem:[#allocation3 + %s2205]]
        %s2207 = scvt.s32.f32 %s2206
        %v2208 = vstv %s2207
        %v2209 = vmul.f32 %v2208, %v2201
        %v2210 = vmul.f32 %v2208, %v2202
        %s2211 = ssub.f32 1.0, %s2207
        %v2212 = vstv %s2211
        %v2213 = vmul.f32 %v2212, %v2193
        %v2214 = vmul.f32 %v2212, %v2195
        %v2215 = vadd.f32 %v2209, %v2213
        %v2216 = vadd.f32 %v2210, %v2214
        %v2217 = vld [vmem:[%s2] sm:$0xff]
        %v2218 = vld [vmem:[%s2 + $0x8] sm:$0xff]
        %v2219 = vld [vmem:[%s2 + $0x10] sm:$0xff]
        %v2220 = vld [vmem:[%s2 + $0x18] sm:$0xff]
        %v2221 = vld [vmem:[%s3] sm:$0xff]
        %v2222 = vld [vmem:[%s3 + $0x8] sm:$0xff]
        %v2223 = vld [vmem:[%s3 + $0x10] sm:$0xff]
        %v2224 = vld [vmem:[%s3 + $0x18] sm:$0xff]
        %v2226 = vsel %vm339, %v2221, 0
        %v2229 = vsel %vm339, %v2222, 0
        %v2232 = vsel %vm339, %v2223, 0
        %v2235 = vsel %vm339, %v2224, 0
        %2237 = vmatprep.subr.mxu0 0.0
        %2238 = vmatpush1.msra.mxu0 0.0
        %2239 = vmatprep.subr.mxu0 0.0
        %2240 = vmatpush1.msra.mxu0 0.0
        %2241 = vmatprep.subr.mxu0 0.0
        %2242 = vmatpush1.msra.mxu0 0.0
        %2243 = vmatprep.subr.mxu0 0.0
        %2244 = vmatpush1.msra.mxu0 0.0
        %2245 = vmatprep.subr.mxu0 0.0
        %2246 = vmatpush1.msra.mxu0 0.0
        %2247 = vmatprep.subr.mxu0 0.0
        %2248 = vmatpush1.msra.mxu0 0.0
        %2249 = vmatprep.subr.mxu0 0.0
        %2250 = vmatpush1.msra.mxu0 0.0
        %2251 = vmatprep.subr.mxu0 0.0
        %2252 = vmatpush1.msra.mxu0 0.0
        %2253 = vmatprep.subr.mxu0 0.0
        %2254 = vmatpush1.msra.mxu0 0.0
        %2255 = vmatprep.subr.mxu0 0.0
        %2256 = vmatpush1.msra.mxu0 0.0
        %2257 = vmatprep.subr.mxu0 0.0
        %2258 = vmatpush1.msra.mxu0 0.0
        %2259 = vmatprep.subr.mxu0 0.0
        %2260 = vmatpush1.msra.mxu0 0.0
        %2261 = vmatprep.subr.mxu0 %v2121
        %2262 = vmatpush1.msra.mxu0 %v2120
        %2263 = vmatprep.subr.mxu0 %v2119
        %2264 = vmatpush1.msra.mxu0 %v2118
        %2265 = vmatprep.subr.mxu0 %v2117
        %2266 = vmatpush1.msra.mxu0 %v2116
        %2267 = vmatprep.subr.mxu0 %v2115
        %2268 = vmatpush1.msra.mxu0 %v2114
        %2269 = vmatprep.subr.mxu0 0.0
        %2270 = vmatpush2.msra.mxu0 0.0
        %2271 = vmatprep.subr.mxu0 0.0
        %2272 = vmatpush2.msra.mxu0 0.0
        %2273 = vmatprep.subr.mxu0 0.0
        %2274 = vmatpush2.msra.mxu0 0.0
        %2275 = vmatprep.subr.mxu0 0.0
        %2276 = vmatpush2.msra.mxu0 0.0
        %2277 = vmatprep.subr.mxu0 0.0
        %2278 = vmatpush2.msra.mxu0 0.0
        %2279 = vmatprep.subr.mxu0 0.0
        %2280 = vmatpush2.msra.mxu0 0.0
        %2281 = vmatprep.subr.mxu0 0.0
        %2282 = vmatpush2.msra.mxu0 0.0
        %2283 = vmatprep.subr.mxu0 0.0
        %2284 = vmatpush2.msra.mxu0 0.0
        %2285 = vmatprep.subr.mxu0 0.0
        %2286 = vmatpush2.msra.mxu0 0.0
        %2287 = vmatprep.subr.mxu0 0.0
        %2288 = vmatpush2.msra.mxu0 0.0
        %2289 = vmatprep.subr.mxu0 0.0
        %2290 = vmatpush2.msra.mxu0 0.0
        %2291 = vmatprep.subr.mxu0 0.0
        %2292 = vmatpush2.msra.mxu0 0.0
        %2293 = vmatprep.subr.mxu0 0.0
        %2294 = vmatpush2.msra.mxu0 0.0
        %2295 = vmatprep.subr.mxu0 0.0
        %2296 = vmatpush2.msra.mxu0 0.0
        %2297 = vmatprep.subr.mxu0 0.0
        %2298 = vmatpush2.msra.mxu0 0.0
        %2299 = vmatprep.subr.mxu0 0.0
        %2300 = vmatpush2.msra.mxu0 0.0
        %2301 = vmatprep.mubr.f32.mxu0 0.0
        %2302 = vmatmul.mubr.f32.gmra.mxu0 %v2226
        %v2303 = vpop.f32.mrf.mxu0
        %v2304 = vadd.f32 0.0, %v2303
        %v2305 = vpop.f32.mrf.mxu0
        %v2306 = vadd.f32 0.0, %v2305
        %2307 = vmatprep.mubr.f32.mxu0 0.0
        %2308 = vmatmul.mubr.f32.gmra.mxu0 %v2229
        %v2309 = vpop.f32.mrf.mxu0
        %v2310 = vadd.f32 0.0, %v2309
        %v2311 = vpop.f32.mrf.mxu0
        %v2312 = vadd.f32 0.0, %v2311
        %2313 = vmatprep.mubr.f32.mxu0 0.0
        %2314 = vmatmul.mubr.f32.gmra.mxu0 %v2232
        %v2315 = vpop.f32.mrf.mxu0
        %v2316 = vadd.f32 0.0, %v2315
        %v2317 = vpop.f32.mrf.mxu0
        %v2318 = vadd.f32 0.0, %v2317
        %2319 = vmatprep.mubr.f32.mxu0 0.0
        %2320 = vmatmul.mubr.f32.gmra.mxu0 %v2235
        %v2321 = vpop.f32.mrf.mxu0
        %v2322 = vadd.f32 0.0, %v2321
        %v2323 = vpop.f32.mrf.mxu0
        %v2324 = vadd.f32 0.0, %v2323
        %2325 = vdwg.mxu0
        %v2327 = vsel %vm441, %v2217, 0
        %v2330 = vsel %vm441, %v2218, 0
        %v2333 = vsel %vm441, %v2219, 0
        %v2336 = vsel %vm441, %v2220, 0
        %2338 = vmatprep.subr.mxu0 0.0
        %2339 = vmatpush1.msra.mxu0 0.0
        %2340 = vmatprep.subr.mxu0 0.0
        %2341 = vmatpush1.msra.mxu0 0.0
        %2342 = vmatprep.subr.mxu0 0.0
        %2343 = vmatpush1.msra.mxu0 0.0
        %2344 = vmatprep.subr.mxu0 0.0
        %2345 = vmatpush1.msra.mxu0 0.0
        %2346 = vmatprep.subr.mxu0 0.0
        %2347 = vmatpush1.msra.mxu0 0.0
        %2348 = vmatprep.subr.mxu0 0.0
        %2349 = vmatpush1.msra.mxu0 0.0
        %2350 = vmatprep.subr.mxu0 0.0
        %2351 = vmatpush1.msra.mxu0 0.0
        %2352 = vmatprep.subr.mxu0 0.0
        %2353 = vmatpush1.msra.mxu0 0.0
        %2354 = vmatprep.subr.mxu0 0.0
        %2355 = vmatpush1.msra.mxu0 0.0
        %2356 = vmatprep.subr.mxu0 0.0
        %2357 = vmatpush1.msra.mxu0 0.0
        %2358 = vmatprep.subr.mxu0 0.0
        %2359 = vmatpush1.msra.mxu0 0.0
        %2360 = vmatprep.subr.mxu0 0.0
        %2361 = vmatpush1.msra.mxu0 0.0
        %2362 = vmatprep.subr.mxu0 0.0
        %2363 = vmatpush1.msra.mxu0 0.0
        %2364 = vmatprep.subr.mxu0 0.0
        %2365 = vmatpush1.msra.mxu0 0.0
        %2366 = vmatprep.subr.mxu0 0.0
        %2367 = vmatpush1.msra.mxu0 0.0
        %2368 = vmatprep.subr.mxu0 %v2216
        %2369 = vmatpush1.msra.mxu0 %v2215
        %2370 = vmatprep.subr.mxu0 0.0
        %2371 = vmatpush2.msra.mxu0 0.0
        %2372 = vmatprep.subr.mxu0 0.0
        %2373 = vmatpush2.msra.mxu0 0.0
        %2374 = vmatprep.subr.mxu0 0.0
        %2375 = vmatpush2.msra.mxu0 0.0
        %2376 = vmatprep.subr.mxu0 0.0
        %2377 = vmatpush2.msra.mxu0 0.0
        %2378 = vmatprep.subr.mxu0 0.0
        %2379 = vmatpush2.msra.mxu0 0.0
        %2380 = vmatprep.subr.mxu0 0.0
        %2381 = vmatpush2.msra.mxu0 0.0
        %2382 = vmatprep.subr.mxu0 0.0
        %2383 = vmatpush2.msra.mxu0 0.0
        %2384 = vmatprep.subr.mxu0 0.0
        %2385 = vmatpush2.msra.mxu0 0.0
        %2386 = vmatprep.subr.mxu0 0.0
        %2387 = vmatpush2.msra.mxu0 0.0
        %2388 = vmatprep.subr.mxu0 0.0
        %2389 = vmatpush2.msra.mxu0 0.0
        %2390 = vmatprep.subr.mxu0 0.0
        %2391 = vmatpush2.msra.mxu0 0.0
        %2392 = vmatprep.subr.mxu0 0.0
        %2393 = vmatpush2.msra.mxu0 0.0
        %2394 = vmatprep.subr.mxu0 0.0
        %2395 = vmatpush2.msra.mxu0 0.0
        %2396 = vmatprep.subr.mxu0 0.0
        %2397 = vmatpush2.msra.mxu0 0.0
        %2398 = vmatprep.subr.mxu0 0.0
        %2399 = vmatpush2.msra.mxu0 0.0
        %2400 = vmatprep.subr.mxu0 0.0
        %2401 = vmatpush2.msra.mxu0 0.0
        %2402 = vmatprep.mubr.f32.mxu0 0.0
        %2403 = vmatmul.mubr.f32.gmra.mxu0 %v2327
        %v2404 = vpop.f32.mrf.mxu0
        %v2405 = vadd.f32 %v2304, %v2404
        %v2406 = vpop.f32.mrf.mxu0
        %v2407 = vadd.f32 %v2306, %v2406
        %2408 = vmatprep.mubr.f32.mxu0 0.0
        %2409 = vmatmul.mubr.f32.gmra.mxu0 %v2330
        %v2410 = vpop.f32.mrf.mxu0
        %v2411 = vadd.f32 %v2310, %v2410
        %v2412 = vpop.f32.mrf.mxu0
        %v2413 = vadd.f32 %v2312, %v2412
        %2414 = vmatprep.mubr.f32.mxu0 0.0
        %2415 = vmatmul.mubr.f32.gmra.mxu0 %v2333
        %v2416 = vpop.f32.mrf.mxu0
        %v2417 = vadd.f32 %v2316, %v2416
        %v2418 = vpop.f32.mrf.mxu0
        %v2419 = vadd.f32 %v2318, %v2418
        %2420 = vmatprep.mubr.f32.mxu0 0.0
        %2421 = vmatmul.mubr.f32.gmra.mxu0 %v2336
        %v2422 = vpop.f32.mrf.mxu0
        %v2423 = vadd.f32 %v2322, %v2422
        %v2424 = vpop.f32.mrf.mxu0
        %v2425 = vadd.f32 %v2324, %v2424
        %2426 = vdwg.mxu0
        %v2427 = vadd.f32 %v2405, %v306
        %v2428 = vadd.f32 %v2407, %v306
        %v2429 = vadd.f32 %v2411, %v311
        %v2430 = vadd.f32 %v2413, %v311
        %v2431 = vadd.f32 %v2417, %v316
        %v2432 = vadd.f32 %v2419, %v316
        %v2433 = vadd.f32 %v2423, %v321
        %v2434 = vadd.f32 %v2425, %v321
        %v2435 = vtanh.pop %v2427
        %v2436 = vtanh.pop %v2428
        %v2437 = vtanh.pop %v2429
        %v2438 = vtanh.pop %v2430
        %v2439 = vtanh.pop %v2431
        %v2440 = vtanh.pop %v2432
        %v2441 = vtanh.pop %v2433
        %v2442 = vtanh.pop %v2434
        %v2443 = vld [vmem:[%s5] sm:$0xff]
        %v2445 = vsel %vm339, %v2443, 0
        %2447 = vmatprep.subr.mxu0 0.0
        %2448 = vmatpush1.msra.mxu0 0.0
        %2449 = vmatprep.subr.mxu0 0.0
        %2450 = vmatpush1.msra.mxu0 0.0
        %2451 = vmatprep.subr.mxu0 0.0
        %2452 = vmatpush1.msra.mxu0 0.0
        %2453 = vmatprep.subr.mxu0 0.0
        %2454 = vmatpush1.msra.mxu0 0.0
        %2455 = vmatprep.subr.mxu0 0.0
        %2456 = vmatpush1.msra.mxu0 0.0
        %2457 = vmatprep.subr.mxu0 0.0
        %2458 = vmatpush1.msra.mxu0 0.0
        %2459 = vmatprep.subr.mxu0 0.0
        %2460 = vmatpush1.msra.mxu0 0.0
        %2461 = vmatprep.subr.mxu0 0.0
        %2462 = vmatpush1.msra.mxu0 0.0
        %2463 = vmatprep.subr.mxu0 0.0
        %2464 = vmatpush1.msra.mxu0 0.0
        %2465 = vmatprep.subr.mxu0 0.0
        %2466 = vmatpush1.msra.mxu0 0.0
        %2467 = vmatprep.subr.mxu0 0.0
        %2468 = vmatpush1.msra.mxu0 0.0
        %2469 = vmatprep.subr.mxu0 0.0
        %2470 = vmatpush1.msra.mxu0 0.0
        %2471 = vmatprep.subr.mxu0 %v2442
        %2472 = vmatpush1.msra.mxu0 %v2441
        %2473 = vmatprep.subr.mxu0 %v2440
        %2474 = vmatpush1.msra.mxu0 %v2439
        %2475 = vmatprep.subr.mxu0 %v2438
        %2476 = vmatpush1.msra.mxu0 %v2437
        %2477 = vmatprep.subr.mxu0 %v2436
        %2478 = vmatpush1.msra.mxu0 %v2435
        %2479 = vmatprep.subr.mxu0 0.0
        %2480 = vmatpush2.msra.mxu0 0.0
        %2481 = vmatprep.subr.mxu0 0.0
        %2482 = vmatpush2.msra.mxu0 0.0
        %2483 = vmatprep.subr.mxu0 0.0
        %2484 = vmatpush2.msra.mxu0 0.0
        %2485 = vmatprep.subr.mxu0 0.0
        %2486 = vmatpush2.msra.mxu0 0.0
        %2487 = vmatprep.subr.mxu0 0.0
        %2488 = vmatpush2.msra.mxu0 0.0
        %2489 = vmatprep.subr.mxu0 0.0
        %2490 = vmatpush2.msra.mxu0 0.0
        %2491 = vmatprep.subr.mxu0 0.0
        %2492 = vmatpush2.msra.mxu0 0.0
        %2493 = vmatprep.subr.mxu0 0.0
        %2494 = vmatpush2.msra.mxu0 0.0
        %2495 = vmatprep.subr.mxu0 0.0
        %2496 = vmatpush2.msra.mxu0 0.0
        %2497 = vmatprep.subr.mxu0 0.0
        %2498 = vmatpush2.msra.mxu0 0.0
        %2499 = vmatprep.subr.mxu0 0.0
        %2500 = vmatpush2.msra.mxu0 0.0
        %2501 = vmatprep.subr.mxu0 0.0
        %2502 = vmatpush2.msra.mxu0 0.0
        %2503 = vmatprep.subr.mxu0 0.0
        %2504 = vmatpush2.msra.mxu0 0.0
        %2505 = vmatprep.subr.mxu0 0.0
        %2506 = vmatpush2.msra.mxu0 0.0
        %2507 = vmatprep.subr.mxu0 0.0
        %2508 = vmatpush2.msra.mxu0 0.0
        %2509 = vmatprep.subr.mxu0 0.0
        %2510 = vmatpush2.msra.mxu0 0.0
        %2511 = vmatprep.mubr.f32.mxu0 0.0
        %2512 = vmatmul.mubr.f32.gmra.mxu0 %v2445
        %v2513 = vpop.f32.mrf.mxu0
        %v2514 = vadd.f32 %v327, %v2513
        %v2515 = vpop.f32.mrf.mxu0
        %v2516 = vadd.f32 %v327, %v2515
        %2517 = vdwg.mxu0
        %s2518 = scalar_lea.vmem %s298, 96 [#allocation5]
        %2519 = vst [vmem:[%s2518] sm:$0xff] %v2514
        %2520 = vst [vmem:[%s2518 + $0x8] sm:$0xff] %v2516
        %s2521 = sand.u32 %s163, 1
        %s2522 = sand.u32 %s163, 1
        %s2523 = smul.addr %s2522, 112
        %s2524 = scalar_lea.vmem [#allocation5], %s2523
        // Predicated region
        $region68: #{model_forward.1} parent=62 // pred_check
          %p2525 = pneg %p173
        $region69: #{model_forward.1} parent=62 // pred_check_branch
          %2527 = sbr.rel (%p2525) target = $region71
        $region70: #{model_forward.1} parent=62 // pred_region
          %s2528 = smul.addr %s24, 2
          %s2529 = smul.addr %s2528, 8
          %s2530 = scalar_lea.vmem %s7, %s2529
          // Predicated region
          $region72: #{model_forward.1} parent=70 // pred_check
            _
          $region73: #{model_forward.1} parent=70 // pred_check_branch
            %2532 = sbr.rel (0) target = $region75
          $region74: #{model_forward.1} parent=70 // pred_region
            // Predicated region
            $region76: #{model_forward.1} parent=74 // pred_check
              _
            $region77: #{model_forward.1} parent=74 // pred_check_branch
              %2534 = sbr.rel (0) target = $region79
            $region78: #{model_forward.1} parent=74 // pred_region
              loop: start=0, step=1, limit=1
              $region80: #{model_forward.1} parent=78 // loop_pre_header
                _
              $region81: #{model_forward.1} parent=78 // loop_header
                %s2536 = sphi 0, %s2540
                %p2537 = scmp.ge.s32.totalorder %s2536, 1
                %s2541 = sphi %s2524, %s2524
                %s2542 = sphi %s2530, %s2530
              $region82: #{model_forward.1} parent=78 // loop_header_branch
                %2539 = sbr.rel (%p2537) target = $region86
              $region83: #{model_forward.1} parent=78 // loop_body
                %v2543 = vld [vmem:[%s2541] sm:$0xff]
                %2544 = vst [vmem:[%s2542] sm:$0xff] %v2543
                %v2545 = vld [vmem:[%s2541 + $0x8] sm:$0xff]
                %2546 = vst [vmem:[%s2542 + $0x8] sm:$0xff] %v2545
                %v2547 = vld [vmem:[%s2541 + $0x10] sm:$0xff]
                %2548 = vst [vmem:[%s2542 + $0x20] sm:$0xff] %v2547
                %v2549 = vld [vmem:[%s2541 + $0x18] sm:$0xff]
                %2550 = vst [vmem:[%s2542 + $0x28] sm:$0xff] %v2549
                %v2551 = vld [vmem:[%s2541 + $0x20] sm:$0xff]
                %2552 = vst [vmem:[%s2542 + $0x40] sm:$0xff] %v2551
                %v2553 = vld [vmem:[%s2541 + $0x28] sm:$0xff]
                %2554 = vst [vmem:[%s2542 + $0x48] sm:$0xff] %v2553
                %v2555 = vld [vmem:[%s2541 + $0x30] sm:$0xff]
                %2556 = vst [vmem:[%s2542 + $0x60] sm:$0xff] %v2555
                %v2557 = vld [vmem:[%s2541 + $0x38] sm:$0xff]
                %2558 = vst [vmem:[%s2542 + $0x68] sm:$0xff] %v2557
                %v2559 = vld [vmem:[%s2541 + $0x40] sm:$0xff]
                %2560 = vst [vmem:[%s2542 + $0x80] sm:$0xff] %v2559
                %v2561 = vld [vmem:[%s2541 + $0x48] sm:$0xff]
                %2562 = vst [vmem:[%s2542 + $0x88] sm:$0xff] %v2561
                %v2563 = vld [vmem:[%s2541 + $0x50] sm:$0xff]
                %2564 = vst [vmem:[%s2542 + $0xa0] sm:$0xff] %v2563
                %v2565 = vld [vmem:[%s2541 + $0x58] sm:$0xff]
                %2566 = vst [vmem:[%s2542 + $0xa8] sm:$0xff] %v2565
                %v2567 = vld [vmem:[%s2541 + $0x60] sm:$0xff]
                %2568 = vst [vmem:[%s2542 + $0xc0] sm:$0xff] %v2567
                %v2569 = vld [vmem:[%s2541 + $0x68] sm:$0xff]
                %2570 = vst [vmem:[%s2542 + $0xc8] sm:$0xff] %v2569
              $region84: #{model_forward.1} parent=78 // loop_footer
                %s2540 = sadd.s32 1, %s2536
              $region85: #{model_forward.1} parent=78 // loop_footer_branch
                %2535 = sbr.rel target = $region81
              $region86: #{model_forward.1} parent=78 // loop_exit
                _
            $region79: #{model_forward.1} parent=74 // pred_fallthru
              _
            // Predicated region
            $region87: #{model_forward.1} parent=74 // pred_check
              _
            $region88: #{model_forward.1} parent=74 // pred_check_branch
              %2572 = sbr.rel target = $region90
            $region89: #{model_forward.1} parent=74 // pred_region
              _
            $region90: #{model_forward.1} parent=74 // pred_fallthru
              _
          $region75: #{model_forward.1} parent=70 // pred_fallthru
            _
          %2573 = vnop
        $region71: #{model_forward.1} parent=62 // pred_fallthru
          _
      $region63: #{model_forward.1} parent=5 // pred_fallthru
        _
      %p2574 = scmp.le.s32.totalorder 2, %s19
      // Predicated region
      $region91: #{model_forward.1} parent=5 // pred_check
        %p2575 = pneg %p2574
      $region92: #{model_forward.1} parent=5 // pred_check_branch
        %2577 = sbr.rel (%p2575) target = $region94
      $region93: #{model_forward.1} parent=5 // pred_region
        %s2578 = ssub.s32 %s19, 2
        // Predicated region
        $region95: #{model_forward.1} parent=93 // pred_check
          %p2579 = pneg %p179
        $region96: #{model_forward.1} parent=93 // pred_check_branch
          %2581 = sbr.rel (%p2579) target = $region98
        $region97: #{model_forward.1} parent=93 // pred_region
          %s2582 = sand.u32 %s164, 1
          %s2583 = sand.u32 %s164, 1
          %s2584 = smul.addr %s2583, 112
          %s2585 = scalar_lea.vmem [#allocation5], %s2584
        $region98: #{model_forward.1} parent=93 // pred_fallthru
          _
      $region94: #{model_forward.1} parent=5 // pred_fallthru
        _
    $region6: #{model_forward.1} parent=1 // loop_footer
      %s23 = sadd.s32 1, %s19
    $region7: #{model_forward.1} parent=1 // loop_footer_branch
      %18 = sbr.rel target = $region3
    $region8: #{model_forward.1} parent=1 // loop_exit
      _

</llo_original>
